<compile_context>
chip_gen: v5e
topology: v5e:2x2
jax: 0.10.0
libtpu: 0.0.40
codegen_flags: <defaults>
</compile_context>

<pallas_src>
import math
import functools

import jax
import jax.numpy as jnp
from jax.experimental import pallas as pl
from jax.experimental.pallas import tpu as pltpu


def _mha_kernel(q_ref, k_ref, v_ref,
                wq_ref, bq_ref, wk_ref, bk_ref,
                wv_ref, bv_ref, wo_ref, bo_ref,
                out_ref, *, n_head, batch, seq):
    """Whole MHA forward on (batch*seq, n_embd) row-packed activations."""
    x_q = q_ref[...]                       # (R, E), R = batch*seq
    x_k = k_ref[...]
    x_v = v_ref[...]

    # Input projections: full-width MXU matmuls + bias (rows packed B*S deep).
    qp = jnp.dot(x_q, wq_ref[...], preferred_element_type=jnp.float32) + bq_ref[...]
    kp = jnp.dot(x_k, wk_ref[...], preferred_element_type=jnp.float32) + bk_ref[...]
    vp = jnp.dot(x_v, wv_ref[...], preferred_element_type=jnp.float32) + bv_ref[...]

    R, E = qp.shape
    D = E // n_head
    G = n_head * batch                     # one attention "group" per (head, batch)

    def to_heads(x):
        # (R, E) -> (G, S, D); group g = h * batch + b holds head h of batch b,
        # so attention never mixes positions across different (batch, head).
        x = x.reshape(R, n_head, D)        # split lane dim into heads
        x = jnp.swapaxes(x, 0, 1)          # (H, R, D)
        return x.reshape(G, seq, D)        # (H*B, S, D)

    qh = to_heads(qp)
    kh = to_heads(kp)
    vh = to_heads(vp)

    # Batched scaled dot-product attention (contracts last dims; no explicit .T).
    inv_sqrt_d = 1.0 / math.sqrt(D)
    s = jnp.einsum('gqd,gkd->gqk', qh, kh,
                   preferred_element_type=jnp.float32) * inv_sqrt_d   # (G, S, S)
    m = jnp.max(s, axis=-1, keepdims=True)
    p = jnp.exp(s - m)
    p = p * pl.reciprocal(jnp.sum(p, axis=-1, keepdims=True), approx=True)
    o = jnp.einsum('gqk,gkd->gqd', p, vh,
                   preferred_element_type=jnp.float32)                # (G, S, D)

    # Undo the head-major regrouping: (G, S, D) -> (R, E)  (== permute+reshape
    # of the PyTorch forward), done once on the batched result instead of a
    # lane-axis concatenate of per-head pieces.
    merged = jnp.swapaxes(o.reshape(n_head, R, D), 0, 1).reshape(R, E)

    # Output projection.
    out = jnp.dot(merged, wo_ref[...], preferred_element_type=jnp.float32) + bo_ref[...]
    out_ref[...] = out.astype(out_ref.dtype)
    # TODO(synk): at realistic S/E, grid over (B, q-tiles) with flash-style
    # online softmax over a KV axis ('arbitrary'), K-tile the projections, use
    # bf16 weights and pipeline_mode=pl.Buffered(1) for the grid-invariant
    # weight blocks so the VMEM budget also fits v7x (64 MiB).


def multi_head_attention(q, k, v, params, *, n_head):
    """q, k, v: (B, S, E) float32.  params: dict of (E, E) weights / (E,) biases."""
    B, S, E = q.shape
    R = B * S
    wq, bq = params["wq"], params["bq"].reshape(1, E)
    wk, bk = params["wk"], params["bk"].reshape(1, E)
    wv, bv = params["wv"], params["bv"].reshape(1, E)
    wo, bo = params["wo"], params["bo"].reshape(1, E)

    # Fold batch into the row (sublane) axis; single kernel invocation (no grid),
    # everything resident in VMEM.
    q2 = q.reshape(R, E)
    k2 = k.reshape(R, E)
    v2 = v.reshape(R, E)

    vmem = pl.BlockSpec(memory_space=pltpu.MemorySpace.VMEM)
    kernel = functools.partial(_mha_kernel, n_head=n_head, batch=B, seq=S)

    out = pl.pallas_call(
        kernel,
        out_shape=jax.ShapeDtypeStruct((R, E), q.dtype),
        in_specs=[vmem] * 11,
        out_specs=vmem,
    )(q2, k2, v2, wq, bq, wk, bk, wv, bv, wo, bo)

    return out.reshape(B, S, E)


def _reference(q, k, v, params, *, n_head):
    """Pure-JAX reference mirroring the PyTorch forward (mask=False)."""
    B, S, E = q.shape
    D = E // n_head
    qp = q @ params["wq"] + params["bq"]
    kp = k @ params["wk"] + params["bk"]
    vp = v @ params["wv"] + params["bv"]
    reshape = lambda x: x.reshape(B, S, n_head, D).transpose(0, 2, 1, 3)
    qh, kh, vh = reshape(qp), reshape(kp), reshape(vp)
    score = (qh @ kh.transpose(0, 1, 3, 2)) / math.sqrt(D)
    score = jax.nn.softmax(score, axis=-1) @ vh
    score = score.transpose(0, 2, 1, 3).reshape(B, S, E)
    return score @ params["wo"] + params["bo"]


if __name__ == "__main__":
    B, S, E, H = 2, 8, 32, 4   # batch=2, seq=8, n_embd=32, n_head=4

    key = jax.random.PRNGKey(0)
    keys = jax.random.split(key, 11)

    bound = 1.0 / math.sqrt(E)  # torch.nn.Linear default init range
    params = {
        "wq": jax.random.uniform(keys[0], (E, E), jnp.float32, -bound, bound),
        "bq": jax.random.uniform(keys[1], (E,),   jnp.float32, -bound, bound),
        "wk": jax.random.uniform(keys[2], (E, E), jnp.float32, -bound, bound),
        "bk": jax.random.uniform(keys[3], (E,),   jnp.float32, -bound, bound),
        "wv": jax.random.uniform(keys[4], (E, E), jnp.float32, -bound, bound),
        "bv": jax.random.uniform(keys[5], (E,),   jnp.float32, -bound, bound),
        "wo": jax.random.uniform(keys[6], (E, E), jnp.float32, -bound, bound),
        "bo": jax.random.uniform(keys[7], (E,),   jnp.float32, -bound, bound),
    }

    q = jax.random.normal(keys[8],  (B, S, E), jnp.float32)
    k = jax.random.normal(keys[9],  (B, S, E), jnp.float32)
    v = jax.random.normal(keys[10], (B, S, E), jnp.float32)

    out = multi_head_attention(q, k, v, params, n_head=H)
    out = jax.block_until_ready(out)

    ref = _reference(q, k, v, params, n_head=H)
    assert out.shape == (B, S, E)
    # Tolerance is 1e-3 (not 1e-5) only because the softmax denominator uses the
    # EUP approximate reciprocal; any structural bug would show errors >> 1e-3.
    assert jnp.allclose(out, ref, atol=1e-3, rtol=1e-3), "mismatch vs. reference"

    print("KERNEL_OK")
</pallas_src>

<mosaic_0001>
module attributes {stable_mosaic.version = 11 : i64} {
  func.func @_mha_kernel(%arg0: memref<16x32xf32, #tpu.memory_space<vmem>>, %arg1: memref<16x32xf32, #tpu.memory_space<vmem>>, %arg2: memref<16x32xf32, #tpu.memory_space<vmem>>, %arg3: memref<32x32xf32, #tpu.memory_space<vmem>>, %arg4: memref<1x32xf32, #tpu.memory_space<vmem>>, %arg5: memref<32x32xf32, #tpu.memory_space<vmem>>, %arg6: memref<1x32xf32, #tpu.memory_space<vmem>>, %arg7: memref<32x32xf32, #tpu.memory_space<vmem>>, %arg8: memref<1x32xf32, #tpu.memory_space<vmem>>, %arg9: memref<32x32xf32, #tpu.memory_space<vmem>>, %arg10: memref<1x32xf32, #tpu.memory_space<vmem>>, %arg11: memref<16x32xf32, #tpu.memory_space<vmem>>) attributes {dimension_semantics = [], scalar_prefetch = 0 : i64, scratch_operands = 0 : i64, tpu.core_type = #tpu.core_type<tc>} {
    %c0 = arith.constant 0 : index
    %c0_0 = arith.constant 0 : index
    %0 = vector.load %arg0[%c0, %c0_0] : memref<16x32xf32, #tpu.memory_space<vmem>>, vector<16x32xf32>
    %c0_1 = arith.constant 0 : index
    %c0_2 = arith.constant 0 : index
    %1 = vector.load %arg1[%c0_1, %c0_2] : memref<16x32xf32, #tpu.memory_space<vmem>>, vector<16x32xf32>
    %c0_3 = arith.constant 0 : index
    %c0_4 = arith.constant 0 : index
    %2 = vector.load %arg2[%c0_3, %c0_4] : memref<16x32xf32, #tpu.memory_space<vmem>>, vector<16x32xf32>
    %c0_5 = arith.constant 0 : index
    %c0_6 = arith.constant 0 : index
    %3 = vector.load %arg3[%c0_5, %c0_6] : memref<32x32xf32, #tpu.memory_space<vmem>>, vector<32x32xf32>
    %cst = arith.constant dense<0.000000e+00> : vector<16x32xf32>
    %4 = tpu.matmul %0, %3, %cst {dimension_numbers = #tpu.dot_dimension_numbers<[1], [0], [0], [1], [0, 0, 1, 1], [], []>} : vector<16x32xf32>, vector<32x32xf32>, vector<16x32xf32> -> vector<16x32xf32>
    %c0_7 = arith.constant 0 : index
    %c0_8 = arith.constant 0 : index
    %5 = vector.load %arg4[%c0_7, %c0_8] : memref<1x32xf32, #tpu.memory_space<vmem>>, vector<1x32xf32>
    %6 = vector.broadcast %5 : vector<1x32xf32> to vector<16x32xf32>
    %7 = arith.addf %4, %6 : vector<16x32xf32>
    %c0_9 = arith.constant 0 : index
    %c0_10 = arith.constant 0 : index
    %8 = vector.load %arg5[%c0_9, %c0_10] : memref<32x32xf32, #tpu.memory_space<vmem>>, vector<32x32xf32>
    %cst_11 = arith.constant dense<0.000000e+00> : vector<16x32xf32>
    %9 = tpu.matmul %1, %8, %cst_11 {dimension_numbers = #tpu.dot_dimension_numbers<[1], [0], [0], [1], [0, 0, 1, 1], [], []>} : vector<16x32xf32>, vector<32x32xf32>, vector<16x32xf32> -> vector<16x32xf32>
    %c0_12 = arith.constant 0 : index
    %c0_13 = arith.constant 0 : index
    %10 = vector.load %arg6[%c0_12, %c0_13] : memref<1x32xf32, #tpu.memory_space<vmem>>, vector<1x32xf32>
    %11 = vector.broadcast %10 : vector<1x32xf32> to vector<16x32xf32>
    %12 = arith.addf %9, %11 : vector<16x32xf32>
    %c0_14 = arith.constant 0 : index
    %c0_15 = arith.constant 0 : index
    %13 = vector.load %arg7[%c0_14, %c0_15] : memref<32x32xf32, #tpu.memory_space<vmem>>, vector<32x32xf32>
    %cst_16 = arith.constant dense<0.000000e+00> : vector<16x32xf32>
    %14 = tpu.matmul %2, %13, %cst_16 {dimension_numbers = #tpu.dot_dimension_numbers<[1], [0], [0], [1], [0, 0, 1, 1], [], []>} : vector<16x32xf32>, vector<32x32xf32>, vector<16x32xf32> -> vector<16x32xf32>
    %c0_17 = arith.constant 0 : index
    %c0_18 = arith.constant 0 : index
    %15 = vector.load %arg8[%c0_17, %c0_18] : memref<1x32xf32, #tpu.memory_space<vmem>>, vector<1x32xf32>
    %16 = vector.broadcast %15 : vector<1x32xf32> to vector<16x32xf32>
    %17 = arith.addf %14, %16 : vector<16x32xf32>
    %18 = vector.shape_cast %7 : vector<16x32xf32> to vector<16x4x8xf32>
    %19 = tpu.transpose %18, [1, 0, 2] : vector<16x4x8xf32> -> vector<4x16x8xf32>
    %20 = vector.shape_cast %19 : vector<4x16x8xf32> to vector<8x8x8xf32>
    %21 = vector.shape_cast %12 : vector<16x32xf32> to vector<16x4x8xf32>
    %22 = tpu.transpose %21, [1, 0, 2] : vector<16x4x8xf32> -> vector<4x16x8xf32>
    %23 = vector.shape_cast %22 : vector<4x16x8xf32> to vector<8x8x8xf32>
    %24 = vector.shape_cast %17 : vector<16x32xf32> to vector<16x4x8xf32>
    %25 = tpu.transpose %24, [1, 0, 2] : vector<16x4x8xf32> -> vector<4x16x8xf32>
    %26 = vector.shape_cast %25 : vector<4x16x8xf32> to vector<8x8x8xf32>
    "tpu.trace_start"() <{level = 10 : i32, message = "gqd,gkd->gqk"}> : () -> ()
    %cst_19 = arith.constant dense<0.000000e+00> : vector<8x8x8xf32>
    %27 = tpu.matmul %20, %23, %cst_19 {dimension_numbers = #tpu.dot_dimension_numbers<[2], [2], [1], [1], [0, 0, 0, 1, 1, 1], [0], [0]>} : vector<8x8x8xf32>, vector<8x8x8xf32>, vector<8x8x8xf32> -> vector<8x8x8xf32>
    "tpu.trace_stop"() : () -> ()
    %cst_20 = arith.constant 0.353553385 : f32
    %28 = vector.broadcast %cst_20 : f32 to vector<8x8x8xf32>
    %29 = arith.mulf %27, %28 : vector<8x8x8xf32>
    %cst_21 = arith.constant dense<0xFF800000> : vector<8x8xf32>
    %30 = vector.multi_reduction <maximumf>, %29, %cst_21 [2] : vector<8x8x8xf32> to vector<8x8xf32>
    %31 = vector.shape_cast %30 : vector<8x8xf32> to vector<8x8x1xf32>
    %32 = vector.broadcast %31 : vector<8x8x1xf32> to vector<8x8x8xf32>
    %33 = arith.subf %29, %32 : vector<8x8x8xf32>
    %34 = math.exp %33 : vector<8x8x8xf32>
    %cst_22 = arith.constant dense<0.000000e+00> : vector<8x8xf32>
    %35 = vector.multi_reduction <add>, %34, %cst_22 [2] : vector<8x8x8xf32> to vector<8x8xf32>
    %36 = vector.shape_cast %35 : vector<8x8xf32> to vector<8x8x1xf32>
    %37 = tpu.reciprocal %36 {approx = true} : vector<8x8x1xf32> -> vector<8x8x1xf32>
    %38 = vector.broadcast %37 : vector<8x8x1xf32> to vector<8x8x8xf32>
    %39 = arith.mulf %34, %38 : vector<8x8x8xf32>
    "tpu.trace_start"() <{level = 10 : i32, message = "gqk,gkd->gqd"}> : () -> ()
    %cst_23 = arith.constant dense<0.000000e+00> : vector<8x8x8xf32>
    %40 = tpu.matmul %39, %26, %cst_23 {dimension_numbers = #tpu.dot_dimension_numbers<[2], [1], [1], [2], [0, 0, 0, 1, 1, 2], [0], [0]>} : vector<8x8x8xf32>, vector<8x8x8xf32>, vector<8x8x8xf32> -> vector<8x8x8xf32>
    "tpu.trace_stop"() : () -> ()
    %41 = vector.shape_cast %40 : vector<8x8x8xf32> to vector<4x16x8xf32>
    %42 = tpu.transpose %41, [1, 0, 2] : vector<4x16x8xf32> -> vector<16x4x8xf32>
    %43 = vector.shape_cast %42 : vector<16x4x8xf32> to vector<16x32xf32>
    %c0_24 = arith.constant 0 : index
    %c0_25 = arith.constant 0 : index
    %44 = vector.load %arg9[%c0_24, %c0_25] : memref<32x32xf32, #tpu.memory_space<vmem>>, vector<32x32xf32>
    %cst_26 = arith.constant dense<0.000000e+00> : vector<16x32xf32>
    %45 = tpu.matmul %43, %44, %cst_26 {dimension_numbers = #tpu.dot_dimension_numbers<[1], [0], [0], [1], [0, 0, 1, 1], [], []>} : vector<16x32xf32>, vector<32x32xf32>, vector<16x32xf32> -> vector<16x32xf32>
    %c0_27 = arith.constant 0 : index
    %c0_28 = arith.constant 0 : index
    %46 = vector.load %arg10[%c0_27, %c0_28] : memref<1x32xf32, #tpu.memory_space<vmem>>, vector<1x32xf32>
    %47 = vector.broadcast %46 : vector<1x32xf32> to vector<16x32xf32>
    %48 = arith.addf %45, %47 : vector<16x32xf32>
    %c0_29 = arith.constant 0 : index
    %c0_30 = arith.constant 0 : index
    %49 = vector.load %arg11[%c0_29, %c0_30] : memref<16x32xf32, #tpu.memory_space<vmem>>, vector<16x32xf32>
    tpu.vector_store %arg11[%c0_29, %c0_30], %48 {strides = array<i32>} : memref<16x32xf32, #tpu.memory_space<vmem>>, vector<16x32xf32>,
    return
  }
}

</mosaic_0001>

<llo_original>
// kernel: tpu_custom_call.1
$region0: #{tpu_custom_call.1}
  #allocation0 [shape = 'u32[]', space=smem, size = 0x4, offset = 0x4, fixed_abs, tag = 'smem constant byte address 0x4 - core index']
  #allocation1 [shape = 'u32[72,128]{1,0:T(1,128)}', space=vmem, size = 0x9000, scoped, tag = 'internal scratch']
  %s0 = inlined_call_operand.hbm [shape: f32[16,32], index: 0, kind: input, shape index: {}]
  %s1 = inlined_call_operand.hbm [shape: f32[16,32], index: 1, kind: input, shape index: {}]
  %s2 = inlined_call_operand.hbm [shape: f32[16,32], index: 2, kind: input, shape index: {}]
  %s3 = inlined_call_operand.hbm [shape: f32[32,32], index: 3, kind: input, shape index: {}]
  %s4 = inlined_call_operand.vmem [shape: f32[1,32], index: 4, kind: input, shape index: {}]
  %s5 = inlined_call_operand.hbm [shape: f32[32,32], index: 5, kind: input, shape index: {}]
  %s6 = inlined_call_operand.vmem [shape: f32[1,32], index: 6, kind: input, shape index: {}]
  %s7 = inlined_call_operand.hbm [shape: f32[32,32], index: 7, kind: input, shape index: {}]
  %s8 = inlined_call_operand.vmem [shape: f32[1,32], index: 8, kind: input, shape index: {}]
  %s9 = inlined_call_operand.hbm [shape: f32[32,32], index: 9, kind: input, shape index: {}]
  %s10 = inlined_call_operand.vmem [shape: f32[1,32], index: 10, kind: input, shape index: {}]
  %s11 = inlined_call_operand.hbm [shape: f32[16,32], index: 11, kind: output, shape index: {}]
  %s12 = sld [smem:[#allocation0]]
  $region82: #{tpu_custom_call.1} parent=0
    _
  %s14 = ssub.s32 1, %s12
  %s15 = scalar_select 0, %s14, %s12
  $region1: #{tpu_custom_call.1} parent=0
    #allocation2 [shape = 'u8[8192]{0}', space=vmem, size = 0x2000, scoped, tag = 'input window, operand 0, single buffered']
    #allocation3 [shape = 's32[1]{0}', space=sflag, size = 0x4, scoped, tag = 'scoped memory for tpu_custom_call.1']
    #allocation4 [shape = 's32[1]{0}', space=sflag, size = 0x4, scoped, tag = 'scoped memory for tpu_custom_call.1']
    #allocation5 [shape = 'u8[8192]{0}', space=vmem, size = 0x2000, scoped, tag = 'input window, operand 1, single buffered']
    #allocation6 [shape = 's32[1]{0}', space=sflag, size = 0x4, scoped, tag = 'scoped memory for tpu_custom_call.1']
    #allocation7 [shape = 'u8[8192]{0}', space=vmem, size = 0x2000, scoped, tag = 'input window, operand 2, single buffered']
    #allocation8 [shape = 'u8[16384]{0}', space=vmem, size = 0x4000, scoped, tag = 'input window, operand 3, single buffered']
    #allocation9 [shape = 's32[1]{0}', space=sflag, size = 0x4, scoped, tag = 'scoped memory for tpu_custom_call.1']
    #allocation10 [shape = 'u8[16384]{0}', space=vmem, size = 0x4000, scoped, tag = 'input window, operand 5, single buffered']
    #allocation11 [shape = 'u8[16384]{0}', space=vmem, size = 0x4000, scoped, tag = 'input window, operand 7, single buffered']
    #allocation12 [shape = 's32[1]{0}', space=sflag, size = 0x4, scoped, tag = 'scoped memory for tpu_custom_call.1']
    #allocation13 [shape = 'u8[16384]{0}', space=vmem, size = 0x4000, scoped, tag = 'input window, operand 9, single buffered']
    #allocation14 [shape = 'u8[8192]{0}', space=vmem, size = 0x2000, scoped, tag = 'output window, operand 0, single buffered']
    %16 = vsyncpa [#allocation3], 0
    %17 = vsyncpa [#allocation6], 0
    %18 = vsyncpa [#allocation9], 0
    %19 = vsyncpa [#allocation12], 0
    %20 = vsyncpa [#allocation4], 0
    // Predicated region
    $region2: #{tpu_custom_call.1} parent=1 // pred_check
      _
    $region3: #{tpu_custom_call.1} parent=1 // pred_check_branch
      %22 = sbr.rel (0) target = $region5
    $region4: #{tpu_custom_call.1} parent=1 // pred_region
      %24 = vsyncadd [#allocation3], 0
      %s25 = sshll.u32 %s0, 4
      %s26 = int_to_ptr.hbm [resolvable:$true] %s25
      %s27 = sshll.u32 [#allocation2], 4
      %s28 = int_to_ptr.vmem [resolvable:$true] %s27
      %33 = dma.hbm_to_vmem [thread:$0]  %s26, 256, %s28, [#allocation3], 128, 128, 8
    $region5: #{tpu_custom_call.1} parent=1 // pred_fallthru
      _
    // Predicated region
    $region6: #{tpu_custom_call.1} parent=1 // pred_check
      _
    $region7: #{tpu_custom_call.1} parent=1 // pred_check_branch
      %35 = sbr.rel (0) target = $region9
    $region8: #{tpu_custom_call.1} parent=1 // pred_region
      %37 = vsyncadd [#allocation6], 0
      %s38 = sshll.u32 %s1, 4
      %s39 = int_to_ptr.hbm [resolvable:$true] %s38
      %s40 = sshll.u32 [#allocation5], 4
      %s41 = int_to_ptr.vmem [resolvable:$true] %s40
      %46 = dma.hbm_to_vmem [thread:$0]  %s39, 256, %s41, [#allocation6], 128, 128, 8
    $region9: #{tpu_custom_call.1} parent=1 // pred_fallthru
      _
    // Predicated region
    $region10: #{tpu_custom_call.1} parent=1 // pred_check
      _
    $region11: #{tpu_custom_call.1} parent=1 // pred_check_branch
      %48 = sbr.rel (0) target = $region13
    $region12: #{tpu_custom_call.1} parent=1 // pred_region
      %50 = vsyncadd [#allocation6], 0
      %s51 = sshll.u32 %s2, 4
      %s52 = int_to_ptr.hbm [resolvable:$true] %s51
      %s53 = sshll.u32 [#allocation7], 4
      %s54 = int_to_ptr.vmem [resolvable:$true] %s53
      %59 = dma.hbm_to_vmem [thread:$0]  %s52, 256, %s54, [#allocation6], 128, 128, 8
    $region13: #{tpu_custom_call.1} parent=1 // pred_fallthru
      _
    // Predicated region
    $region14: #{tpu_custom_call.1} parent=1 // pred_check
      _
    $region15: #{tpu_custom_call.1} parent=1 // pred_check_branch
      %61 = sbr.rel (0) target = $region17
    $region16: #{tpu_custom_call.1} parent=1 // pred_region
      %63 = vsyncadd [#allocation9], 0
      %s64 = sshll.u32 %s3, 4
      %s65 = int_to_ptr.hbm [resolvable:$true] %s64
      %s66 = sshll.u32 [#allocation8], 4
      %s67 = int_to_ptr.vmem [resolvable:$true] %s66
      %72 = dma.hbm_to_vmem [thread:$0]  %s65, 512, %s67, [#allocation9], 128, 128, 8
    $region17: #{tpu_custom_call.1} parent=1 // pred_fallthru
      _
    // Predicated region
    $region18: #{tpu_custom_call.1} parent=1 // pred_check
      _
    $region19: #{tpu_custom_call.1} parent=1 // pred_check_branch
      %74 = sbr.rel (0) target = $region21
    $region20: #{tpu_custom_call.1} parent=1 // pred_region
      _
    $region21: #{tpu_custom_call.1} parent=1 // pred_fallthru
      _
    // Predicated region
    $region22: #{tpu_custom_call.1} parent=1 // pred_check
      _
    $region23: #{tpu_custom_call.1} parent=1 // pred_check_branch
      %76 = sbr.rel (0) target = $region25
    $region24: #{tpu_custom_call.1} parent=1 // pred_region
      %78 = vsyncadd [#allocation9], 0
      %s79 = sshll.u32 %s5, 4
      %s80 = int_to_ptr.hbm [resolvable:$true] %s79
      %s81 = sshll.u32 [#allocation10], 4
      %s82 = int_to_ptr.vmem [resolvable:$true] %s81
      %87 = dma.hbm_to_vmem [thread:$0]  %s80, 512, %s82, [#allocation9], 128, 128, 8
    $region25: #{tpu_custom_call.1} parent=1 // pred_fallthru
      _
    // Predicated region
    $region26: #{tpu_custom_call.1} parent=1 // pred_check
      _
    $region27: #{tpu_custom_call.1} parent=1 // pred_check_branch
      %89 = sbr.rel (0) target = $region29
    $region28: #{tpu_custom_call.1} parent=1 // pred_region
      _
    $region29: #{tpu_custom_call.1} parent=1 // pred_fallthru
      _
    // Predicated region
    $region30: #{tpu_custom_call.1} parent=1 // pred_check
      _
    $region31: #{tpu_custom_call.1} parent=1 // pred_check_branch
      %91 = sbr.rel (0) target = $region33
    $region32: #{tpu_custom_call.1} parent=1 // pred_region
      %93 = vsyncadd [#allocation12], 0
      %s94 = sshll.u32 %s7, 4
      %s95 = int_to_ptr.hbm [resolvable:$true] %s94
      %s96 = sshll.u32 [#allocation11], 4
      %s97 = int_to_ptr.vmem [resolvable:$true] %s96
      %102 = dma.hbm_to_vmem [thread:$0]  %s95, 512, %s97, [#allocation12], 128, 128, 8
    $region33: #{tpu_custom_call.1} parent=1 // pred_fallthru
      _
    // Predicated region
    $region34: #{tpu_custom_call.1} parent=1 // pred_check
      _
    $region35: #{tpu_custom_call.1} parent=1 // pred_check_branch
      %104 = sbr.rel (0) target = $region37
    $region36: #{tpu_custom_call.1} parent=1 // pred_region
      _
    $region37: #{tpu_custom_call.1} parent=1 // pred_fallthru
      _
    // Predicated region
    $region38: #{tpu_custom_call.1} parent=1 // pred_check
      _
    $region39: #{tpu_custom_call.1} parent=1 // pred_check_branch
      %106 = sbr.rel (0) target = $region41
    $region40: #{tpu_custom_call.1} parent=1 // pred_region
      %108 = vsyncadd [#allocation12], 0
      %s109 = sshll.u32 %s9, 4
      %s110 = int_to_ptr.hbm [resolvable:$true] %s109
      %s111 = sshll.u32 [#allocation13], 4
      %s112 = int_to_ptr.vmem [resolvable:$true] %s111
      %117 = dma.hbm_to_vmem [thread:$0]  %s110, 512, %s112, [#allocation12], 128, 128, 8
    $region41: #{tpu_custom_call.1} parent=1 // pred_fallthru
      _
    // Predicated region
    $region42: #{tpu_custom_call.1} parent=1 // pred_check
      _
    $region43: #{tpu_custom_call.1} parent=1 // pred_check_branch
      %119 = sbr.rel (0) target = $region45
    $region44: #{tpu_custom_call.1} parent=1 // pred_region
      _
    $region45: #{tpu_custom_call.1} parent=1 // pred_fallthru
      _
    // Predicated region
    $region46: #{tpu_custom_call.1} parent=1 // pred_check
      _
    $region47: #{tpu_custom_call.1} parent=1 // pred_check_branch
      %121 = sbr.rel (0) target = $region49
    $region48: #{tpu_custom_call.1} parent=1 // pred_region
      %123 = dma.done [#allocation3], 256
    $region49: #{tpu_custom_call.1} parent=1 // pred_fallthru
      _
    // Predicated region
    $region50: #{tpu_custom_call.1} parent=1 // pred_check
      _
    $region51: #{tpu_custom_call.1} parent=1 // pred_check_branch
      %125 = sbr.rel (0) target = $region53
    $region52: #{tpu_custom_call.1} parent=1 // pred_region
      %127 = dma.done [#allocation6], 256
    $region53: #{tpu_custom_call.1} parent=1 // pred_fallthru
      _
    // Predicated region
    $region54: #{tpu_custom_call.1} parent=1 // pred_check
      _
    $region55: #{tpu_custom_call.1} parent=1 // pred_check_branch
      %129 = sbr.rel (0) target = $region57
    $region56: #{tpu_custom_call.1} parent=1 // pred_region
      %131 = dma.done [#allocation6], 256
    $region57: #{tpu_custom_call.1} parent=1 // pred_fallthru
      _
    // Predicated region
    $region58: #{tpu_custom_call.1} parent=1 // pred_check
      _
    $region59: #{tpu_custom_call.1} parent=1 // pred_check_branch
      %133 = sbr.rel (0) target = $region61
    $region60: #{tpu_custom_call.1} parent=1 // pred_region
      %135 = dma.done [#allocation9], 512
    $region61: #{tpu_custom_call.1} parent=1 // pred_fallthru
      _
    // Predicated region
    $region62: #{tpu_custom_call.1} parent=1 // pred_check
      _
    $region63: #{tpu_custom_call.1} parent=1 // pred_check_branch
      %137 = sbr.rel (0) target = $region65
    $region64: #{tpu_custom_call.1} parent=1 // pred_region
      %139 = dma.done [#allocation9], 512
    $region65: #{tpu_custom_call.1} parent=1 // pred_fallthru
      _
    // Predicated region
    $region66: #{tpu_custom_call.1} parent=1 // pred_check
      _
    $region67: #{tpu_custom_call.1} parent=1 // pred_check_branch
      %141 = sbr.rel (0) target = $region69
    $region68: #{tpu_custom_call.1} parent=1 // pred_region
      %143 = dma.done [#allocation12], 512
    $region69: #{tpu_custom_call.1} parent=1 // pred_fallthru
      _
    // Predicated region
    $region70: #{tpu_custom_call.1} parent=1 // pred_check
      _
    $region71: #{tpu_custom_call.1} parent=1 // pred_check_branch
      %145 = sbr.rel (0) target = $region73
    $region72: #{tpu_custom_call.1} parent=1 // pred_region
      %147 = dma.done [#allocation12], 512
    $region73: #{tpu_custom_call.1} parent=1 // pred_fallthru
      _
    %v148 = vld [vmem:[#allocation2] sm:$0xff]
    %v149 = vld [vmem:[#allocation2 + $0x8] sm:$0xff]
    %v150 = vld [vmem:[#allocation5] sm:$0xff]
    %v151 = vld [vmem:[#allocation5 + $0x8] sm:$0xff]
    %v152 = vld [vmem:[#allocation7] sm:$0xff]
    %v153 = vld [vmem:[#allocation7 + $0x8] sm:$0xff]
    %v154 = vld [vmem:[#allocation8] sm:$0xff]
    %v155 = vld [vmem:[#allocation8 + $0x8] sm:$0xff]
    %v156 = vld [vmem:[#allocation8 + $0x10] sm:$0xff]
    %v157 = vld [vmem:[#allocation8 + $0x18] sm:$0xff]
    %v158 = vld [vmem:[%s4] sm:$0x1]
    %v160 = vperm.slane %v158, 0
    %vm162 = vcmask 261120
    %v164 = vsel %vm162, %v148, 0
    %v167 = vsel %vm162, %v149, 0
    %169 = vmatpush.msra.mxu0 0.0
    %170 = vmatpush.msra.mxu0 0.0
    %171 = vmatpush.msra.mxu0 0.0
    %172 = vmatpush.msra.mxu0 0.0
    %173 = vmatpush.msra.mxu0 0.0
    %174 = vmatpush.msra.mxu0 0.0
    %175 = vmatpush.msra.mxu0 0.0
    %176 = vmatpush.msra.mxu0 0.0
    %177 = vmatpush.msra.mxu0 0.0
    %178 = vmatpush.msra.mxu0 0.0
    %179 = vmatpush.msra.mxu0 0.0
    %180 = vmatpush.msra.mxu0 0.0
    %181 = vmatpush.msra.mxu0 %v157
    %182 = vmatpush.msra.mxu0 %v156
    %183 = vmatpush.msra.mxu0 %v155
    %184 = vmatpush.msra.mxu0 %v154
    %185 = vmatmul.f32.gmra.mxu0 %v164
    %v186 = vpop.f32.mrf.mxu0
    %v187 = vadd.f32 %v160, %v186
    %188 = vmatmul.f32.gmra.mxu0 %v167
    %v189 = vpop.f32.mrf.mxu0
    %v190 = vadd.f32 %v160, %v189
    %191 = vdwg.mxu0
    %v192 = vld [vmem:[#allocation10] sm:$0xff]
    %v193 = vld [vmem:[#allocation10 + $0x8] sm:$0xff]
    %v194 = vld [vmem:[#allocation10 + $0x10] sm:$0xff]
    %v195 = vld [vmem:[#allocation10 + $0x18] sm:$0xff]
    %v196 = vld [vmem:[%s6] sm:$0x1]
    %v198 = vperm.slane %v196, 0
    %v201 = vsel %vm162, %v150, 0
    %v204 = vsel %vm162, %v151, 0
    %206 = vmatpush.msra.mxu0 0.0
    %207 = vmatpush.msra.mxu0 0.0
    %208 = vmatpush.msra.mxu0 0.0
    %209 = vmatpush.msra.mxu0 0.0
    %210 = vmatpush.msra.mxu0 0.0
    %211 = vmatpush.msra.mxu0 0.0
    %212 = vmatpush.msra.mxu0 0.0
    %213 = vmatpush.msra.mxu0 0.0
    %214 = vmatpush.msra.mxu0 0.0
    %215 = vmatpush.msra.mxu0 0.0
    %216 = vmatpush.msra.mxu0 0.0
    %217 = vmatpush.msra.mxu0 0.0
    %218 = vmatpush.msra.mxu0 %v195
    %219 = vmatpush.msra.mxu0 %v194
    %220 = vmatpush.msra.mxu0 %v193
    %221 = vmatpush.msra.mxu0 %v192
    %222 = vmatmul.f32.gmra.mxu0 %v201
    %v223 = vpop.f32.mrf.mxu0
    %v224 = vadd.f32 %v198, %v223
    %225 = vmatmul.f32.gmra.mxu0 %v204
    %v226 = vpop.f32.mrf.mxu0
    %v227 = vadd.f32 %v198, %v226
    %228 = vdwg.mxu0
    %v229 = vld [vmem:[#allocation11] sm:$0xff]
    %v230 = vld [vmem:[#allocation11 + $0x8] sm:$0xff]
    %v231 = vld [vmem:[#allocation11 + $0x10] sm:$0xff]
    %v232 = vld [vmem:[#allocation11 + $0x18] sm:$0xff]
    %v233 = vld [vmem:[%s8] sm:$0x1]
    %v235 = vperm.slane %v233, 0
    %v238 = vsel %vm162, %v152, 0
    %v241 = vsel %vm162, %v153, 0
    %243 = vmatpush.msra.mxu0 0.0
    %244 = vmatpush.msra.mxu0 0.0
    %245 = vmatpush.msra.mxu0 0.0
    %246 = vmatpush.msra.mxu0 0.0
    %247 = vmatpush.msra.mxu0 0.0
    %248 = vmatpush.msra.mxu0 0.0
    %249 = vmatpush.msra.mxu0 0.0
    %250 = vmatpush.msra.mxu0 0.0
    %251 = vmatpush.msra.mxu0 0.0
    %252 = vmatpush.msra.mxu0 0.0
    %253 = vmatpush.msra.mxu0 0.0
    %254 = vmatpush.msra.mxu0 0.0
    %255 = vmatpush.msra.mxu0 %v232
    %256 = vmatpush.msra.mxu0 %v231
    %257 = vmatpush.msra.mxu0 %v230
    %258 = vmatpush.msra.mxu0 %v229
    %259 = vmatmul.f32.gmra.mxu0 %v238
    %v260 = vpop.f32.mrf.mxu0
    %v261 = vadd.f32 %v235, %v260
    %262 = vmatmul.f32.gmra.mxu0 %v241
    %v263 = vpop.f32.mrf.mxu0
    %v264 = vadd.f32 %v235, %v263
    %265 = vdwg.mxu0
    %268 = vrot.lane.b32.xlu0 %v187, 120
    %v269 = vpop.permute.xlu0 %268
    %270 = vrot.lane.b32.xlu0 %v190, 120
    %v271 = vpop.permute.xlu0 %270
    %274 = vrot.lane.b32.xlu0 %v187, 112
    %v275 = vpop.permute.xlu0 %274
    %276 = vrot.lane.b32.xlu0 %v190, 112
    %v277 = vpop.permute.xlu0 %276
    %280 = vrot.lane.b32.xlu0 %v187, 104
    %v281 = vpop.permute.xlu0 %280
    %282 = vrot.lane.b32.xlu0 %v190, 104
    %v283 = vpop.permute.xlu0 %282
    %v286 = vrot.slane %v275, 4
    %vm287 = vcmask 1047556
    %v288 = vsel %vm287, %v286, %v187
    %v289 = vrot.slane %v187, 4
    %v290 = vsel %vm287, %v275, %v289
    %v292 = vunpack.c.l.s4 1983009808
    %v293 = vunpack.c.0.s8 %v292
    %v294 = vperm.slane %v288, %v293
    %v296 = vunpack.c.l.s4 1983009808
    %v297 = vunpack.c.0.s8 %v296
    %v298 = vperm.slane %v290, %v297
    %v299 = vrot.slane %v281, 4
    %v300 = vsel %vm287, %v299, %v269
    %v301 = vrot.slane %v269, 4
    %v302 = vsel %vm287, %v281, %v301
    %v304 = vunpack.c.l.s4 1983009808
    %v305 = vunpack.c.0.s8 %v304
    %v306 = vperm.slane %v300, %v305
    %v308 = vunpack.c.l.s4 1983009808
    %v309 = vunpack.c.0.s8 %v308
    %v310 = vperm.slane %v302, %v309
    %v311 = vrot.slane %v306, 4
    %v312 = vsel %vm287, %v311, %v294
    %v313 = vrot.slane %v294, 4
    %v314 = vsel %vm287, %v306, %v313
    %v316 = vunpack.c.l.s4 1934713408
    %v317 = vunpack.c.0.s8 %v316
    %v318 = vperm.slane %v312, %v317
    %v320 = vunpack.c.l.s4 1934713408
    %v321 = vunpack.c.0.s8 %v320
    %v322 = vperm.slane %v314, %v321
    %v323 = vrot.slane %v310, 4
    %v324 = vsel %vm287, %v323, %v298
    %v325 = vrot.slane %v298, 4
    %v326 = vsel %vm287, %v310, %v325
    %v328 = vunpack.c.l.s4 1934713408
    %v329 = vunpack.c.0.s8 %v328
    %v330 = vperm.slane %v324, %v329
    %v332 = vunpack.c.l.s4 1934713408
    %v333 = vunpack.c.0.s8 %v332
    %v334 = vperm.slane %v326, %v333
    %v335 = vrot.slane %v318, 4
    %v336 = vsel %vm287, 0.0, %v335
    %v337 = vrot.slane %v322, 4
    %v338 = vsel %vm287, 0.0, %v337
    %v339 = vrot.slane %v330, 4
    %v340 = vsel %vm287, 0.0, %v339
    %v341 = vrot.slane %v334, 4
    %v342 = vsel %vm287, 0.0, %v341
    %v343 = vrot.slane %v277, 4
    %v344 = vsel %vm287, %v343, %v190
    %v345 = vrot.slane %v190, 4
    %v346 = vsel %vm287, %v277, %v345
    %v348 = vunpack.c.l.s4 1983009808
    %v349 = vunpack.c.0.s8 %v348
    %v350 = vperm.slane %v344, %v349
    %v352 = vunpack.c.l.s4 1983009808
    %v353 = vunpack.c.0.s8 %v352
    %v354 = vperm.slane %v346, %v353
    %v355 = vrot.slane %v283, 4
    %v356 = vsel %vm287, %v355, %v271
    %v357 = vrot.slane %v271, 4
    %v358 = vsel %vm287, %v283, %v357
    %v360 = vunpack.c.l.s4 1983009808
    %v361 = vunpack.c.0.s8 %v360
    %v362 = vperm.slane %v356, %v361
    %v364 = vunpack.c.l.s4 1983009808
    %v365 = vunpack.c.0.s8 %v364
    %v366 = vperm.slane %v358, %v365
    %v367 = vrot.slane %v362, 4
    %v368 = vsel %vm287, %v367, %v350
    %v369 = vrot.slane %v350, 4
    %v370 = vsel %vm287, %v362, %v369
    %v372 = vunpack.c.l.s4 1934713408
    %v373 = vunpack.c.0.s8 %v372
    %v374 = vperm.slane %v368, %v373
    %v376 = vunpack.c.l.s4 1934713408
    %v377 = vunpack.c.0.s8 %v376
    %v378 = vperm.slane %v370, %v377
    %v379 = vrot.slane %v366, 4
    %v380 = vsel %vm287, %v379, %v354
    %v381 = vrot.slane %v354, 4
    %v382 = vsel %vm287, %v366, %v381
    %v384 = vunpack.c.l.s4 1934713408
    %v385 = vunpack.c.0.s8 %v384
    %v386 = vperm.slane %v380, %v385
    %v388 = vunpack.c.l.s4 1934713408
    %v389 = vunpack.c.0.s8 %v388
    %v390 = vperm.slane %v382, %v389
    %v391 = vrot.slane %v374, 4
    %v392 = vsel %vm287, 0.0, %v391
    %v393 = vrot.slane %v378, 4
    %v394 = vsel %vm287, 0.0, %v393
    %v395 = vrot.slane %v386, 4
    %v396 = vsel %vm287, 0.0, %v395
    %v397 = vrot.slane %v390, 4
    %v398 = vsel %vm287, 0.0, %v397
    %v399 = vsel %vm287, %v337, %v318
    %v401 = vunpack.c.l.s4 1983009808
    %v402 = vunpack.c.0.s8 %v401
    %v403 = vperm.slane %v399, %v402
    %v404 = vrot.slane %v338, 4
    %v405 = vsel %vm287, %v404, %v336
    %v407 = vunpack.c.l.s4 1983009808
    %v408 = vunpack.c.0.s8 %v407
    %v409 = vperm.slane %v405, %v408
    %v410 = vsel %vm287, %v341, %v330
    %v412 = vunpack.c.l.s4 1983009808
    %v413 = vunpack.c.0.s8 %v412
    %v414 = vperm.slane %v410, %v413
    %v415 = vrot.slane %v342, 4
    %v416 = vsel %vm287, %v415, %v340
    %v418 = vunpack.c.l.s4 1983009808
    %v419 = vunpack.c.0.s8 %v418
    %v420 = vperm.slane %v416, %v419
    %v421 = vrot.slane %v409, 4
    %v422 = vsel %vm287, %v421, %v403
    %v423 = vrot.slane %v403, 4
    %v424 = vsel %vm287, %v409, %v423
    %v426 = vunpack.c.l.s4 1934713408
    %v427 = vunpack.c.0.s8 %v426
    %v428 = vperm.slane %v422, %v427
    %v430 = vunpack.c.l.s4 1934713408
    %v431 = vunpack.c.0.s8 %v430
    %v432 = vperm.slane %v424, %v431
    %v433 = vrot.slane %v420, 4
    %v434 = vsel %vm287, %v433, %v414
    %v435 = vrot.slane %v414, 4
    %v436 = vsel %vm287, %v420, %v435
    %v438 = vunpack.c.l.s4 1934713408
    %v439 = vunpack.c.0.s8 %v438
    %v440 = vperm.slane %v434, %v439
    %v442 = vunpack.c.l.s4 1934713408
    %v443 = vunpack.c.0.s8 %v442
    %v444 = vperm.slane %v436, %v443
    %v445 = vrot.slane %v440, 4
    %v446 = vsel %vm287, %v445, %v428
    %v447 = vrot.slane %v428, 4
    %v448 = vsel %vm287, %v440, %v447
    %v449 = vrot.slane %v444, 4
    %v450 = vsel %vm287, %v449, %v432
    %v451 = vrot.slane %v432, 4
    %v452 = vsel %vm287, %v444, %v451
    %v453 = vsel %vm287, %v393, %v374
    %v455 = vunpack.c.l.s4 1983009808
    %v456 = vunpack.c.0.s8 %v455
    %v457 = vperm.slane %v453, %v456
    %v458 = vrot.slane %v394, 4
    %v459 = vsel %vm287, %v458, %v392
    %v461 = vunpack.c.l.s4 1983009808
    %v462 = vunpack.c.0.s8 %v461
    %v463 = vperm.slane %v459, %v462
    %v464 = vsel %vm287, %v397, %v386
    %v466 = vunpack.c.l.s4 1983009808
    %v467 = vunpack.c.0.s8 %v466
    %v468 = vperm.slane %v464, %v467
    %v469 = vrot.slane %v398, 4
    %v470 = vsel %vm287, %v469, %v396
    %v472 = vunpack.c.l.s4 1983009808
    %v473 = vunpack.c.0.s8 %v472
    %v474 = vperm.slane %v470, %v473
    %v475 = vrot.slane %v463, 4
    %v476 = vsel %vm287, %v475, %v457
    %v477 = vrot.slane %v457, 4
    %v478 = vsel %vm287, %v463, %v477
    %v480 = vunpack.c.l.s4 1934713408
    %v481 = vunpack.c.0.s8 %v480
    %v482 = vperm.slane %v476, %v481
    %v484 = vunpack.c.l.s4 1934713408
    %v485 = vunpack.c.0.s8 %v484
    %v486 = vperm.slane %v478, %v485
    %v487 = vrot.slane %v474, 4
    %v488 = vsel %vm287, %v487, %v468
    %v489 = vrot.slane %v468, 4
    %v490 = vsel %vm287, %v474, %v489
    %v492 = vunpack.c.l.s4 1934713408
    %v493 = vunpack.c.0.s8 %v492
    %v494 = vperm.slane %v488, %v493
    %v496 = vunpack.c.l.s4 1934713408
    %v497 = vunpack.c.0.s8 %v496
    %v498 = vperm.slane %v490, %v497
    %v499 = vrot.slane %v494, 4
    %v500 = vsel %vm287, %v499, %v482
    %v501 = vrot.slane %v482, 4
    %v502 = vsel %vm287, %v494, %v501
    %v503 = vrot.slane %v498, 4
    %v504 = vsel %vm287, %v503, %v486
    %v505 = vrot.slane %v486, 4
    %v506 = vsel %vm287, %v498, %v505
    %509 = vrot.lane.b32.xlu0 %v224, 120
    %v510 = vpop.permute.xlu0 %509
    %511 = vrot.lane.b32.xlu0 %v227, 120
    %v512 = vpop.permute.xlu0 %511
    %515 = vrot.lane.b32.xlu0 %v224, 112
    %v516 = vpop.permute.xlu0 %515
    %517 = vrot.lane.b32.xlu0 %v227, 112
    %v518 = vpop.permute.xlu0 %517
    %521 = vrot.lane.b32.xlu0 %v224, 104
    %v522 = vpop.permute.xlu0 %521
    %523 = vrot.lane.b32.xlu0 %v227, 104
    %v524 = vpop.permute.xlu0 %523
    %v527 = vrot.slane %v516, 4
    %v528 = vsel %vm287, %v527, %v224
    %v529 = vrot.slane %v224, 4
    %v530 = vsel %vm287, %v516, %v529
    %v532 = vunpack.c.l.s4 1983009808
    %v533 = vunpack.c.0.s8 %v532
    %v534 = vperm.slane %v528, %v533
    %v536 = vunpack.c.l.s4 1983009808
    %v537 = vunpack.c.0.s8 %v536
    %v538 = vperm.slane %v530, %v537
    %v539 = vrot.slane %v522, 4
    %v540 = vsel %vm287, %v539, %v510
    %v541 = vrot.slane %v510, 4
    %v542 = vsel %vm287, %v522, %v541
    %v544 = vunpack.c.l.s4 1983009808
    %v545 = vunpack.c.0.s8 %v544
    %v546 = vperm.slane %v540, %v545
    %v548 = vunpack.c.l.s4 1983009808
    %v549 = vunpack.c.0.s8 %v548
    %v550 = vperm.slane %v542, %v549
    %v551 = vrot.slane %v546, 4
    %v552 = vsel %vm287, %v551, %v534
    %v553 = vrot.slane %v534, 4
    %v554 = vsel %vm287, %v546, %v553
    %v556 = vunpack.c.l.s4 1934713408
    %v557 = vunpack.c.0.s8 %v556
    %v558 = vperm.slane %v552, %v557
    %v560 = vunpack.c.l.s4 1934713408
    %v561 = vunpack.c.0.s8 %v560
    %v562 = vperm.slane %v554, %v561
    %v563 = vrot.slane %v550, 4
    %v564 = vsel %vm287, %v563, %v538
    %v565 = vrot.slane %v538, 4
    %v566 = vsel %vm287, %v550, %v565
    %v568 = vunpack.c.l.s4 1934713408
    %v569 = vunpack.c.0.s8 %v568
    %v570 = vperm.slane %v564, %v569
    %v572 = vunpack.c.l.s4 1934713408
    %v573 = vunpack.c.0.s8 %v572
    %v574 = vperm.slane %v566, %v573
    %v575 = vrot.slane %v558, 4
    %v576 = vsel %vm287, 0.0, %v575
    %v577 = vrot.slane %v562, 4
    %v578 = vsel %vm287, 0.0, %v577
    %v579 = vrot.slane %v570, 4
    %v580 = vsel %vm287, 0.0, %v579
    %v581 = vrot.slane %v574, 4
    %v582 = vsel %vm287, 0.0, %v581
    %v583 = vrot.slane %v518, 4
    %v584 = vsel %vm287, %v583, %v227
    %v585 = vrot.slane %v227, 4
    %v586 = vsel %vm287, %v518, %v585
    %v588 = vunpack.c.l.s4 1983009808
    %v589 = vunpack.c.0.s8 %v588
    %v590 = vperm.slane %v584, %v589
    %v592 = vunpack.c.l.s4 1983009808
    %v593 = vunpack.c.0.s8 %v592
    %v594 = vperm.slane %v586, %v593
    %v595 = vrot.slane %v524, 4
    %v596 = vsel %vm287, %v595, %v512
    %v597 = vrot.slane %v512, 4
    %v598 = vsel %vm287, %v524, %v597
    %v600 = vunpack.c.l.s4 1983009808
    %v601 = vunpack.c.0.s8 %v600
    %v602 = vperm.slane %v596, %v601
    %v604 = vunpack.c.l.s4 1983009808
    %v605 = vunpack.c.0.s8 %v604
    %v606 = vperm.slane %v598, %v605
    %v607 = vrot.slane %v602, 4
    %v608 = vsel %vm287, %v607, %v590
    %v609 = vrot.slane %v590, 4
    %v610 = vsel %vm287, %v602, %v609
    %v612 = vunpack.c.l.s4 1934713408
    %v613 = vunpack.c.0.s8 %v612
    %v614 = vperm.slane %v608, %v613
    %v616 = vunpack.c.l.s4 1934713408
    %v617 = vunpack.c.0.s8 %v616
    %v618 = vperm.slane %v610, %v617
    %v619 = vrot.slane %v606, 4
    %v620 = vsel %vm287, %v619, %v594
    %v621 = vrot.slane %v594, 4
    %v622 = vsel %vm287, %v606, %v621
    %v624 = vunpack.c.l.s4 1934713408
    %v625 = vunpack.c.0.s8 %v624
    %v626 = vperm.slane %v620, %v625
    %v628 = vunpack.c.l.s4 1934713408
    %v629 = vunpack.c.0.s8 %v628
    %v630 = vperm.slane %v622, %v629
    %v631 = vrot.slane %v614, 4
    %v632 = vsel %vm287, 0.0, %v631
    %v633 = vrot.slane %v618, 4
    %v634 = vsel %vm287, 0.0, %v633
    %v635 = vrot.slane %v626, 4
    %v636 = vsel %vm287, 0.0, %v635
    %v637 = vrot.slane %v630, 4
    %v638 = vsel %vm287, 0.0, %v637
    %v639 = vsel %vm287, %v577, %v558
    %v641 = vunpack.c.l.s4 1983009808
    %v642 = vunpack.c.0.s8 %v641
    %v643 = vperm.slane %v639, %v642
    %v644 = vrot.slane %v578, 4
    %v645 = vsel %vm287, %v644, %v576
    %v647 = vunpack.c.l.s4 1983009808
    %v648 = vunpack.c.0.s8 %v647
    %v649 = vperm.slane %v645, %v648
    %v650 = vsel %vm287, %v581, %v570
    %v652 = vunpack.c.l.s4 1983009808
    %v653 = vunpack.c.0.s8 %v652
    %v654 = vperm.slane %v650, %v653
    %v655 = vrot.slane %v582, 4
    %v656 = vsel %vm287, %v655, %v580
    %v658 = vunpack.c.l.s4 1983009808
    %v659 = vunpack.c.0.s8 %v658
    %v660 = vperm.slane %v656, %v659
    %v661 = vrot.slane %v649, 4
    %v662 = vsel %vm287, %v661, %v643
    %v663 = vrot.slane %v643, 4
    %v664 = vsel %vm287, %v649, %v663
    %v666 = vunpack.c.l.s4 1934713408
    %v667 = vunpack.c.0.s8 %v666
    %v668 = vperm.slane %v662, %v667
    %v670 = vunpack.c.l.s4 1934713408
    %v671 = vunpack.c.0.s8 %v670
    %v672 = vperm.slane %v664, %v671
    %v673 = vrot.slane %v660, 4
    %v674 = vsel %vm287, %v673, %v654
    %v675 = vrot.slane %v654, 4
    %v676 = vsel %vm287, %v660, %v675
    %v678 = vunpack.c.l.s4 1934713408
    %v679 = vunpack.c.0.s8 %v678
    %v680 = vperm.slane %v674, %v679
    %v682 = vunpack.c.l.s4 1934713408
    %v683 = vunpack.c.0.s8 %v682
    %v684 = vperm.slane %v676, %v683
    %v685 = vrot.slane %v680, 4
    %v686 = vsel %vm287, %v685, %v668
    %v687 = vrot.slane %v668, 4
    %v688 = vsel %vm287, %v680, %v687
    %v689 = vrot.slane %v684, 4
    %v690 = vsel %vm287, %v689, %v672
    %v691 = vrot.slane %v672, 4
    %v692 = vsel %vm287, %v684, %v691
    %v693 = vsel %vm287, %v633, %v614
    %v695 = vunpack.c.l.s4 1983009808
    %v696 = vunpack.c.0.s8 %v695
    %v697 = vperm.slane %v693, %v696
    %v698 = vrot.slane %v634, 4
    %v699 = vsel %vm287, %v698, %v632
    %v701 = vunpack.c.l.s4 1983009808
    %v702 = vunpack.c.0.s8 %v701
    %v703 = vperm.slane %v699, %v702
    %v704 = vsel %vm287, %v637, %v626
    %v706 = vunpack.c.l.s4 1983009808
    %v707 = vunpack.c.0.s8 %v706
    %v708 = vperm.slane %v704, %v707
    %v709 = vrot.slane %v638, 4
    %v710 = vsel %vm287, %v709, %v636
    %v712 = vunpack.c.l.s4 1983009808
    %v713 = vunpack.c.0.s8 %v712
    %v714 = vperm.slane %v710, %v713
    %v715 = vrot.slane %v703, 4
    %v716 = vsel %vm287, %v715, %v697
    %v717 = vrot.slane %v697, 4
    %v718 = vsel %vm287, %v703, %v717
    %v720 = vunpack.c.l.s4 1934713408
    %v721 = vunpack.c.0.s8 %v720
    %v722 = vperm.slane %v716, %v721
    %v724 = vunpack.c.l.s4 1934713408
    %v725 = vunpack.c.0.s8 %v724
    %v726 = vperm.slane %v718, %v725
    %v727 = vrot.slane %v714, 4
    %v728 = vsel %vm287, %v727, %v708
    %v729 = vrot.slane %v708, 4
    %v730 = vsel %vm287, %v714, %v729
    %v732 = vunpack.c.l.s4 1934713408
    %v733 = vunpack.c.0.s8 %v732
    %v734 = vperm.slane %v728, %v733
    %v736 = vunpack.c.l.s4 1934713408
    %v737 = vunpack.c.0.s8 %v736
    %v738 = vperm.slane %v730, %v737
    %v739 = vrot.slane %v734, 4
    %v740 = vsel %vm287, %v739, %v722
    %v741 = vrot.slane %v722, 4
    %v742 = vsel %vm287, %v734, %v741
    %v743 = vrot.slane %v738, 4
    %v744 = vsel %vm287, %v743, %v726
    %v745 = vrot.slane %v726, 4
    %v746 = vsel %vm287, %v738, %v745
    %749 = vrot.lane.b32.xlu0 %v261, 120
    %v750 = vpop.permute.xlu0 %749
    %751 = vrot.lane.b32.xlu0 %v264, 120
    %v752 = vpop.permute.xlu0 %751
    %755 = vrot.lane.b32.xlu0 %v261, 112
    %v756 = vpop.permute.xlu0 %755
    %757 = vrot.lane.b32.xlu0 %v264, 112
    %v758 = vpop.permute.xlu0 %757
    %761 = vrot.lane.b32.xlu0 %v261, 104
    %v762 = vpop.permute.xlu0 %761
    %763 = vrot.lane.b32.xlu0 %v264, 104
    %v764 = vpop.permute.xlu0 %763
    %v767 = vrot.slane %v756, 4
    %v768 = vsel %vm287, %v767, %v261
    %v769 = vrot.slane %v261, 4
    %v770 = vsel %vm287, %v756, %v769
    %v772 = vunpack.c.l.s4 1983009808
    %v773 = vunpack.c.0.s8 %v772
    %v774 = vperm.slane %v768, %v773
    %v776 = vunpack.c.l.s4 1983009808
    %v777 = vunpack.c.0.s8 %v776
    %v778 = vperm.slane %v770, %v777
    %v779 = vrot.slane %v762, 4
    %v780 = vsel %vm287, %v779, %v750
    %v781 = vrot.slane %v750, 4
    %v782 = vsel %vm287, %v762, %v781
    %v784 = vunpack.c.l.s4 1983009808
    %v785 = vunpack.c.0.s8 %v784
    %v786 = vperm.slane %v780, %v785
    %v788 = vunpack.c.l.s4 1983009808
    %v789 = vunpack.c.0.s8 %v788
    %v790 = vperm.slane %v782, %v789
    %v791 = vrot.slane %v786, 4
    %v792 = vsel %vm287, %v791, %v774
    %v793 = vrot.slane %v774, 4
    %v794 = vsel %vm287, %v786, %v793
    %v796 = vunpack.c.l.s4 1934713408
    %v797 = vunpack.c.0.s8 %v796
    %v798 = vperm.slane %v792, %v797
    %v800 = vunpack.c.l.s4 1934713408
    %v801 = vunpack.c.0.s8 %v800
    %v802 = vperm.slane %v794, %v801
    %v803 = vrot.slane %v790, 4
    %v804 = vsel %vm287, %v803, %v778
    %v805 = vrot.slane %v778, 4
    %v806 = vsel %vm287, %v790, %v805
    %v808 = vunpack.c.l.s4 1934713408
    %v809 = vunpack.c.0.s8 %v808
    %v810 = vperm.slane %v804, %v809
    %v812 = vunpack.c.l.s4 1934713408
    %v813 = vunpack.c.0.s8 %v812
    %v814 = vperm.slane %v806, %v813
    %v815 = vrot.slane %v798, 4
    %v816 = vsel %vm287, 0.0, %v815
    %v817 = vrot.slane %v802, 4
    %v818 = vsel %vm287, 0.0, %v817
    %v819 = vrot.slane %v810, 4
    %v820 = vsel %vm287, 0.0, %v819
    %v821 = vrot.slane %v814, 4
    %v822 = vsel %vm287, 0.0, %v821
    %v823 = vrot.slane %v758, 4
    %v824 = vsel %vm287, %v823, %v264
    %v825 = vrot.slane %v264, 4
    %v826 = vsel %vm287, %v758, %v825
    %v828 = vunpack.c.l.s4 1983009808
    %v829 = vunpack.c.0.s8 %v828
    %v830 = vperm.slane %v824, %v829
    %v832 = vunpack.c.l.s4 1983009808
    %v833 = vunpack.c.0.s8 %v832
    %v834 = vperm.slane %v826, %v833
    %v835 = vrot.slane %v764, 4
    %v836 = vsel %vm287, %v835, %v752
    %v837 = vrot.slane %v752, 4
    %v838 = vsel %vm287, %v764, %v837
    %v840 = vunpack.c.l.s4 1983009808
    %v841 = vunpack.c.0.s8 %v840
    %v842 = vperm.slane %v836, %v841
    %v844 = vunpack.c.l.s4 1983009808
    %v845 = vunpack.c.0.s8 %v844
    %v846 = vperm.slane %v838, %v845
    %v847 = vrot.slane %v842, 4
    %v848 = vsel %vm287, %v847, %v830
    %v849 = vrot.slane %v830, 4
    %v850 = vsel %vm287, %v842, %v849
    %v852 = vunpack.c.l.s4 1934713408
    %v853 = vunpack.c.0.s8 %v852
    %v854 = vperm.slane %v848, %v853
    %v856 = vunpack.c.l.s4 1934713408
    %v857 = vunpack.c.0.s8 %v856
    %v858 = vperm.slane %v850, %v857
    %v859 = vrot.slane %v846, 4
    %v860 = vsel %vm287, %v859, %v834
    %v861 = vrot.slane %v834, 4
    %v862 = vsel %vm287, %v846, %v861
    %v864 = vunpack.c.l.s4 1934713408
    %v865 = vunpack.c.0.s8 %v864
    %v866 = vperm.slane %v860, %v865
    %v868 = vunpack.c.l.s4 1934713408
    %v869 = vunpack.c.0.s8 %v868
    %v870 = vperm.slane %v862, %v869
    %v871 = vrot.slane %v854, 4
    %v872 = vsel %vm287, 0.0, %v871
    %v873 = vrot.slane %v858, 4
    %v874 = vsel %vm287, 0.0, %v873
    %v875 = vrot.slane %v866, 4
    %v876 = vsel %vm287, 0.0, %v875
    %v877 = vrot.slane %v870, 4
    %v878 = vsel %vm287, 0.0, %v877
    %v879 = vsel %vm287, %v817, %v798
    %v881 = vunpack.c.l.s4 1983009808
    %v882 = vunpack.c.0.s8 %v881
    %v883 = vperm.slane %v879, %v882
    %v884 = vrot.slane %v818, 4
    %v885 = vsel %vm287, %v884, %v816
    %v887 = vunpack.c.l.s4 1983009808
    %v888 = vunpack.c.0.s8 %v887
    %v889 = vperm.slane %v885, %v888
    %v890 = vsel %vm287, %v821, %v810
    %v892 = vunpack.c.l.s4 1983009808
    %v893 = vunpack.c.0.s8 %v892
    %v894 = vperm.slane %v890, %v893
    %v895 = vrot.slane %v822, 4
    %v896 = vsel %vm287, %v895, %v820
    %v898 = vunpack.c.l.s4 1983009808
    %v899 = vunpack.c.0.s8 %v898
    %v900 = vperm.slane %v896, %v899
    %v901 = vrot.slane %v889, 4
    %v902 = vsel %vm287, %v901, %v883
    %v903 = vrot.slane %v883, 4
    %v904 = vsel %vm287, %v889, %v903
    %v906 = vunpack.c.l.s4 1934713408
    %v907 = vunpack.c.0.s8 %v906
    %v908 = vperm.slane %v902, %v907
    %v910 = vunpack.c.l.s4 1934713408
    %v911 = vunpack.c.0.s8 %v910
    %v912 = vperm.slane %v904, %v911
    %v913 = vrot.slane %v900, 4
    %v914 = vsel %vm287, %v913, %v894
    %v915 = vrot.slane %v894, 4
    %v916 = vsel %vm287, %v900, %v915
    %v918 = vunpack.c.l.s4 1934713408
    %v919 = vunpack.c.0.s8 %v918
    %v920 = vperm.slane %v914, %v919
    %v922 = vunpack.c.l.s4 1934713408
    %v923 = vunpack.c.0.s8 %v922
    %v924 = vperm.slane %v916, %v923
    %v925 = vrot.slane %v920, 4
    %v926 = vsel %vm287, %v925, %v908
    %v927 = vrot.slane %v908, 4
    %v928 = vsel %vm287, %v920, %v927
    %v929 = vrot.slane %v924, 4
    %v930 = vsel %vm287, %v929, %v912
    %v931 = vrot.slane %v912, 4
    %v932 = vsel %vm287, %v924, %v931
    %v933 = vsel %vm287, %v873, %v854
    %v935 = vunpack.c.l.s4 1983009808
    %v936 = vunpack.c.0.s8 %v935
    %v937 = vperm.slane %v933, %v936
    %v938 = vrot.slane %v874, 4
    %v939 = vsel %vm287, %v938, %v872
    %v941 = vunpack.c.l.s4 1983009808
    %v942 = vunpack.c.0.s8 %v941
    %v943 = vperm.slane %v939, %v942
    %v944 = vsel %vm287, %v877, %v866
    %v946 = vunpack.c.l.s4 1983009808
    %v947 = vunpack.c.0.s8 %v946
    %v948 = vperm.slane %v944, %v947
    %v949 = vrot.slane %v878, 4
    %v950 = vsel %vm287, %v949, %v876
    %v952 = vunpack.c.l.s4 1983009808
    %v953 = vunpack.c.0.s8 %v952
    %v954 = vperm.slane %v950, %v953
    %v955 = vrot.slane %v943, 4
    %v956 = vsel %vm287, %v955, %v937
    %v957 = vrot.slane %v937, 4
    %v958 = vsel %vm287, %v943, %v957
    %v960 = vunpack.c.l.s4 1934713408
    %v961 = vunpack.c.0.s8 %v960
    %v962 = vperm.slane %v956, %v961
    %v964 = vunpack.c.l.s4 1934713408
    %v965 = vunpack.c.0.s8 %v964
    %v966 = vperm.slane %v958, %v965
    %v967 = vrot.slane %v954, 4
    %v968 = vsel %vm287, %v967, %v948
    %v969 = vrot.slane %v948, 4
    %v970 = vsel %vm287, %v954, %v969
    %v972 = vunpack.c.l.s4 1934713408
    %v973 = vunpack.c.0.s8 %v972
    %v974 = vperm.slane %v968, %v973
    %v976 = vunpack.c.l.s4 1934713408
    %v977 = vunpack.c.0.s8 %v976
    %v978 = vperm.slane %v970, %v977
    %v979 = vrot.slane %v974, 4
    %v980 = vsel %vm287, %v979, %v962
    %v981 = vrot.slane %v962, 4
    %v982 = vsel %vm287, %v974, %v981
    %v983 = vrot.slane %v978, 4
    %v984 = vsel %vm287, %v983, %v966
    %v985 = vrot.slane %v966, 4
    %v986 = vsel %vm287, %v978, %v985
    %vm987 = vcmask 64512
    %v989 = vsel %vm987, %v446, 0
    %v992 = vsel %vm987, %v686, 0
    %994 = vmatpush.xpose.msra.mxu0 0.0
    %995 = vmatpush.xpose.msra.mxu0 0.0
    %996 = vmatpush.xpose.msra.mxu0 0.0
    %997 = vmatpush.xpose.msra.mxu0 0.0
    %998 = vmatpush.xpose.msra.mxu0 0.0
    %999 = vmatpush.xpose.msra.mxu0 0.0
    %1000 = vmatpush.xpose.msra.mxu0 0.0
    %1001 = vmatpush.xpose.msra.mxu0 0.0
    %1002 = vmatpush.xpose.msra.mxu0 0.0
    %1003 = vmatpush.xpose.msra.mxu0 0.0
    %1004 = vmatpush.xpose.msra.mxu0 0.0
    %1005 = vmatpush.xpose.msra.mxu0 0.0
    %1006 = vmatpush.xpose.msra.mxu0 0.0
    %1007 = vmatpush.xpose.msra.mxu0 0.0
    %1008 = vmatpush.xpose.msra.mxu0 0.0
    %1009 = vmatpush.xpose.msra.mxu0 %v992
    %1010 = vmatmul.f32.gmra.mxu0 %v989
    %v1011 = vpop.f32.mrf.mxu0
    %v1012 = vadd.f32 0.0, %v1011
    %1013 = vdwg.mxu0
    %v1015 = vsel %vm987, %v500, 0
    %v1018 = vsel %vm987, %v740, 0
    %1020 = vmatpush.xpose.msra.mxu0 0.0
    %1021 = vmatpush.xpose.msra.mxu0 0.0
    %1022 = vmatpush.xpose.msra.mxu0 0.0
    %1023 = vmatpush.xpose.msra.mxu0 0.0
    %1024 = vmatpush.xpose.msra.mxu0 0.0
    %1025 = vmatpush.xpose.msra.mxu0 0.0
    %1026 = vmatpush.xpose.msra.mxu0 0.0
    %1027 = vmatpush.xpose.msra.mxu0 0.0
    %1028 = vmatpush.xpose.msra.mxu0 0.0
    %1029 = vmatpush.xpose.msra.mxu0 0.0
    %1030 = vmatpush.xpose.msra.mxu0 0.0
    %1031 = vmatpush.xpose.msra.mxu0 0.0
    %1032 = vmatpush.xpose.msra.mxu0 0.0
    %1033 = vmatpush.xpose.msra.mxu0 0.0
    %1034 = vmatpush.xpose.msra.mxu0 0.0
    %1035 = vmatpush.xpose.msra.mxu0 %v1018
    %1036 = vmatmul.f32.gmra.mxu0 %v1015
    %v1037 = vpop.f32.mrf.mxu0
    %v1038 = vadd.f32 0.0, %v1037
    %1039 = vdwg.mxu0
    %v1041 = vsel %vm987, %v448, 0
    %v1044 = vsel %vm987, %v688, 0
    %1046 = vmatpush.xpose.msra.mxu0 0.0
    %1047 = vmatpush.xpose.msra.mxu0 0.0
    %1048 = vmatpush.xpose.msra.mxu0 0.0
    %1049 = vmatpush.xpose.msra.mxu0 0.0
    %1050 = vmatpush.xpose.msra.mxu0 0.0
    %1051 = vmatpush.xpose.msra.mxu0 0.0
    %1052 = vmatpush.xpose.msra.mxu0 0.0
    %1053 = vmatpush.xpose.msra.mxu0 0.0
    %1054 = vmatpush.xpose.msra.mxu0 0.0
    %1055 = vmatpush.xpose.msra.mxu0 0.0
    %1056 = vmatpush.xpose.msra.mxu0 0.0
    %1057 = vmatpush.xpose.msra.mxu0 0.0
    %1058 = vmatpush.xpose.msra.mxu0 0.0
    %1059 = vmatpush.xpose.msra.mxu0 0.0
    %1060 = vmatpush.xpose.msra.mxu0 0.0
    %1061 = vmatpush.xpose.msra.mxu0 %v1044
    %1062 = vmatmul.f32.gmra.mxu0 %v1041
    %v1063 = vpop.f32.mrf.mxu0
    %v1064 = vadd.f32 0.0, %v1063
    %1065 = vdwg.mxu0
    %v1067 = vsel %vm987, %v502, 0
    %v1070 = vsel %vm987, %v742, 0
    %1072 = vmatpush.xpose.msra.mxu0 0.0
    %1073 = vmatpush.xpose.msra.mxu0 0.0
    %1074 = vmatpush.xpose.msra.mxu0 0.0
    %1075 = vmatpush.xpose.msra.mxu0 0.0
    %1076 = vmatpush.xpose.msra.mxu0 0.0
    %1077 = vmatpush.xpose.msra.mxu0 0.0
    %1078 = vmatpush.xpose.msra.mxu0 0.0
    %1079 = vmatpush.xpose.msra.mxu0 0.0
    %1080 = vmatpush.xpose.msra.mxu0 0.0
    %1081 = vmatpush.xpose.msra.mxu0 0.0
    %1082 = vmatpush.xpose.msra.mxu0 0.0
    %1083 = vmatpush.xpose.msra.mxu0 0.0
    %1084 = vmatpush.xpose.msra.mxu0 0.0
    %1085 = vmatpush.xpose.msra.mxu0 0.0
    %1086 = vmatpush.xpose.msra.mxu0 0.0
    %1087 = vmatpush.xpose.msra.mxu0 %v1070
    %1088 = vmatmul.f32.gmra.mxu0 %v1067
    %v1089 = vpop.f32.mrf.mxu0
    %v1090 = vadd.f32 0.0, %v1089
    %1091 = vdwg.mxu0
    %v1093 = vsel %vm987, %v450, 0
    %v1096 = vsel %vm987, %v690, 0
    %1098 = vmatpush.xpose.msra.mxu0 0.0
    %1099 = vmatpush.xpose.msra.mxu0 0.0
    %1100 = vmatpush.xpose.msra.mxu0 0.0
    %1101 = vmatpush.xpose.msra.mxu0 0.0
    %1102 = vmatpush.xpose.msra.mxu0 0.0
    %1103 = vmatpush.xpose.msra.mxu0 0.0
    %1104 = vmatpush.xpose.msra.mxu0 0.0
    %1105 = vmatpush.xpose.msra.mxu0 0.0
    %1106 = vmatpush.xpose.msra.mxu0 0.0
    %1107 = vmatpush.xpose.msra.mxu0 0.0
    %1108 = vmatpush.xpose.msra.mxu0 0.0
    %1109 = vmatpush.xpose.msra.mxu0 0.0
    %1110 = vmatpush.xpose.msra.mxu0 0.0
    %1111 = vmatpush.xpose.msra.mxu0 0.0
    %1112 = vmatpush.xpose.msra.mxu0 0.0
    %1113 = vmatpush.xpose.msra.mxu0 %v1096
    %1114 = vmatmul.f32.gmra.mxu0 %v1093
    %v1115 = vpop.f32.mrf.mxu0
    %v1116 = vadd.f32 0.0, %v1115
    %1117 = vdwg.mxu0
    %v1119 = vsel %vm987, %v504, 0
    %v1122 = vsel %vm987, %v744, 0
    %1124 = vmatpush.xpose.msra.mxu0 0.0
    %1125 = vmatpush.xpose.msra.mxu0 0.0
    %1126 = vmatpush.xpose.msra.mxu0 0.0
    %1127 = vmatpush.xpose.msra.mxu0 0.0
    %1128 = vmatpush.xpose.msra.mxu0 0.0
    %1129 = vmatpush.xpose.msra.mxu0 0.0
    %1130 = vmatpush.xpose.msra.mxu0 0.0
    %1131 = vmatpush.xpose.msra.mxu0 0.0
    %1132 = vmatpush.xpose.msra.mxu0 0.0
    %1133 = vmatpush.xpose.msra.mxu0 0.0
    %1134 = vmatpush.xpose.msra.mxu0 0.0
    %1135 = vmatpush.xpose.msra.mxu0 0.0
    %1136 = vmatpush.xpose.msra.mxu0 0.0
    %1137 = vmatpush.xpose.msra.mxu0 0.0
    %1138 = vmatpush.xpose.msra.mxu0 0.0
    %1139 = vmatpush.xpose.msra.mxu0 %v1122
    %1140 = vmatmul.f32.gmra.mxu0 %v1119
    %v1141 = vpop.f32.mrf.mxu0
    %v1142 = vadd.f32 0.0, %v1141
    %1143 = vdwg.mxu0
    %v1145 = vsel %vm987, %v452, 0
    %v1148 = vsel %vm987, %v692, 0
    %1150 = vmatpush.xpose.msra.mxu0 0.0
    %1151 = vmatpush.xpose.msra.mxu0 0.0
    %1152 = vmatpush.xpose.msra.mxu0 0.0
    %1153 = vmatpush.xpose.msra.mxu0 0.0
    %1154 = vmatpush.xpose.msra.mxu0 0.0
    %1155 = vmatpush.xpose.msra.mxu0 0.0
    %1156 = vmatpush.xpose.msra.mxu0 0.0
    %1157 = vmatpush.xpose.msra.mxu0 0.0
    %1158 = vmatpush.xpose.msra.mxu0 0.0
    %1159 = vmatpush.xpose.msra.mxu0 0.0
    %1160 = vmatpush.xpose.msra.mxu0 0.0
    %1161 = vmatpush.xpose.msra.mxu0 0.0
    %1162 = vmatpush.xpose.msra.mxu0 0.0
    %1163 = vmatpush.xpose.msra.mxu0 0.0
    %1164 = vmatpush.xpose.msra.mxu0 0.0
    %1165 = vmatpush.xpose.msra.mxu0 %v1148
    %1166 = vmatmul.f32.gmra.mxu0 %v1145
    %v1167 = vpop.f32.mrf.mxu0
    %v1168 = vadd.f32 0.0, %v1167
    %1169 = vdwg.mxu0
    %v1171 = vsel %vm987, %v506, 0
    %v1174 = vsel %vm987, %v746, 0
    %1176 = vmatpush.xpose.msra.mxu0 0.0
    %1177 = vmatpush.xpose.msra.mxu0 0.0
    %1178 = vmatpush.xpose.msra.mxu0 0.0
    %1179 = vmatpush.xpose.msra.mxu0 0.0
    %1180 = vmatpush.xpose.msra.mxu0 0.0
    %1181 = vmatpush.xpose.msra.mxu0 0.0
    %1182 = vmatpush.xpose.msra.mxu0 0.0
    %1183 = vmatpush.xpose.msra.mxu0 0.0
    %1184 = vmatpush.xpose.msra.mxu0 0.0
    %1185 = vmatpush.xpose.msra.mxu0 0.0
    %1186 = vmatpush.xpose.msra.mxu0 0.0
    %1187 = vmatpush.xpose.msra.mxu0 0.0
    %1188 = vmatpush.xpose.msra.mxu0 0.0
    %1189 = vmatpush.xpose.msra.mxu0 0.0
    %1190 = vmatpush.xpose.msra.mxu0 0.0
    %1191 = vmatpush.xpose.msra.mxu0 %v1174
    %1192 = vmatmul.f32.gmra.mxu0 %v1171
    %v1193 = vpop.f32.mrf.mxu0
    %v1194 = vadd.f32 0.0, %v1193
    %1195 = vdwg.mxu0
    %v1196 = vmul.f32 %v1012, 0.35355338
    %v1197 = vmul.f32 %v1038, 0.35355338
    %v1198 = vmul.f32 %v1064, 0.35355338
    %v1199 = vmul.f32 %v1090, 0.35355338
    %v1200 = vmul.f32 %v1116, 0.35355338
    %v1201 = vmul.f32 %v1142, 0.35355338
    %v1202 = vmul.f32 %v1168, 0.35355338
    %v1203 = vmul.f32 %v1194, 0.35355338
    %v1204 = vsel %vm987, %v1196, -inf
    %1205 = vmax.xlane.f32.xlu0 %v1204
    %v1206 = vpop.xlane.xlu0 %1205
    %v1207 = vsel %vm987, %v1197, -inf
    %1208 = vmax.xlane.f32.xlu0 %v1207
    %v1209 = vpop.xlane.xlu0 %1208
    %v1210 = vsel %vm987, %v1198, -inf
    %1211 = vmax.xlane.f32.xlu0 %v1210
    %v1212 = vpop.xlane.xlu0 %1211
    %v1213 = vsel %vm987, %v1199, -inf
    %1214 = vmax.xlane.f32.xlu0 %v1213
    %v1215 = vpop.xlane.xlu0 %1214
    %v1216 = vsel %vm987, %v1200, -inf
    %1217 = vmax.xlane.f32.xlu0 %v1216
    %v1218 = vpop.xlane.xlu0 %1217
    %v1219 = vsel %vm987, %v1201, -inf
    %1220 = vmax.xlane.f32.xlu0 %v1219
    %v1221 = vpop.xlane.xlu0 %1220
    %v1222 = vsel %vm987, %v1202, -inf
    %1223 = vmax.xlane.f32.xlu0 %v1222
    %v1224 = vpop.xlane.xlu0 %1223
    %v1225 = vsel %vm987, %v1203, -inf
    %1226 = vmax.xlane.f32.xlu0 %v1225
    %v1227 = vpop.xlane.xlu0 %1226
    %v1228 = vsub.f32 %v1196, %v1206
    %v1229 = vsub.f32 %v1197, %v1209
    %v1230 = vsub.f32 %v1198, %v1212
    %v1231 = vsub.f32 %v1199, %v1215
    %v1232 = vsub.f32 %v1200, %v1218
    %v1233 = vsub.f32 %v1201, %v1221
    %v1234 = vsub.f32 %v1202, %v1224
    %v1235 = vsub.f32 %v1203, %v1227
    %v1236 = vmul.f32 %v1228, 1.442695
    %v1237 = vpow.pop %v1236
    %v1238 = vmul.f32 %v1229, 1.442695
    %v1239 = vpow.pop %v1238
    %v1240 = vmul.f32 %v1230, 1.442695
    %v1241 = vpow.pop %v1240
    %v1242 = vmul.f32 %v1231, 1.442695
    %v1243 = vpow.pop %v1242
    %v1244 = vmul.f32 %v1232, 1.442695
    %v1245 = vpow.pop %v1244
    %v1246 = vmul.f32 %v1233, 1.442695
    %v1247 = vpow.pop %v1246
    %v1248 = vmul.f32 %v1234, 1.442695
    %v1249 = vpow.pop %v1248
    %v1250 = vmul.f32 %v1235, 1.442695
    %v1251 = vpow.pop %v1250
    %v1252 = vsel %vm987, %v1237, 0.0
    %1253 = vadd.xlane.f32.xlu0 %v1252
    %v1254 = vpop.xlane.xlu0 %1253
    %v1255 = vsel %vm987, %v1239, 0.0
    %1256 = vadd.xlane.f32.xlu0 %v1255
    %v1257 = vpop.xlane.xlu0 %1256
    %v1258 = vsel %vm987, %v1241, 0.0
    %1259 = vadd.xlane.f32.xlu0 %v1258
    %v1260 = vpop.xlane.xlu0 %1259
    %v1261 = vsel %vm987, %v1243, 0.0
    %1262 = vadd.xlane.f32.xlu0 %v1261
    %v1263 = vpop.xlane.xlu0 %1262
    %v1264 = vsel %vm987, %v1245, 0.0
    %1265 = vadd.xlane.f32.xlu0 %v1264
    %v1266 = vpop.xlane.xlu0 %1265
    %v1267 = vsel %vm987, %v1247, 0.0
    %1268 = vadd.xlane.f32.xlu0 %v1267
    %v1269 = vpop.xlane.xlu0 %1268
    %v1270 = vsel %vm987, %v1249, 0.0
    %1271 = vadd.xlane.f32.xlu0 %v1270
    %v1272 = vpop.xlane.xlu0 %1271
    %v1273 = vsel %vm987, %v1251, 0.0
    %1274 = vadd.xlane.f32.xlu0 %v1273
    %v1275 = vpop.xlane.xlu0 %1274
    %v1276 = vrcp.pop %v1254
    %v1277 = vrcp.pop %v1257
    %v1278 = vrcp.pop %v1260
    %v1279 = vrcp.pop %v1263
    %v1280 = vrcp.pop %v1266
    %v1281 = vrcp.pop %v1269
    %v1282 = vrcp.pop %v1272
    %v1283 = vrcp.pop %v1275
    %v1284 = vmul.f32 %v1237, %v1276
    %v1285 = vmul.f32 %v1239, %v1277
    %v1286 = vmul.f32 %v1241, %v1278
    %v1287 = vmul.f32 %v1243, %v1279
    %v1288 = vmul.f32 %v1245, %v1280
    %v1289 = vmul.f32 %v1247, %v1281
    %v1290 = vmul.f32 %v1249, %v1282
    %v1291 = vmul.f32 %v1251, %v1283
    %v1293 = vsel %vm987, %v1284, 0
    %1295 = vmatpush.msra.mxu0 0.0
    %1296 = vmatpush.msra.mxu0 0.0
    %1297 = vmatpush.msra.mxu0 0.0
    %1298 = vmatpush.msra.mxu0 0.0
    %1299 = vmatpush.msra.mxu0 0.0
    %1300 = vmatpush.msra.mxu0 0.0
    %1301 = vmatpush.msra.mxu0 0.0
    %1302 = vmatpush.msra.mxu0 0.0
    %1303 = vmatpush.msra.mxu0 0.0
    %1304 = vmatpush.msra.mxu0 0.0
    %1305 = vmatpush.msra.mxu0 0.0
    %1306 = vmatpush.msra.mxu0 0.0
    %1307 = vmatpush.msra.mxu0 0.0
    %1308 = vmatpush.msra.mxu0 0.0
    %1309 = vmatpush.msra.mxu0 0.0
    %1310 = vmatpush.msra.mxu0 %v926
    %1311 = vmatmul.f32.gmra.mxu0 %v1293
    %v1312 = vpop.f32.mrf.mxu0
    %v1313 = vadd.f32 0.0, %v1312
    %1314 = vdwg.mxu0
    %v1316 = vsel %vm987, %v1285, 0
    %1318 = vmatpush.msra.mxu0 0.0
    %1319 = vmatpush.msra.mxu0 0.0
    %1320 = vmatpush.msra.mxu0 0.0
    %1321 = vmatpush.msra.mxu0 0.0
    %1322 = vmatpush.msra.mxu0 0.0
    %1323 = vmatpush.msra.mxu0 0.0
    %1324 = vmatpush.msra.mxu0 0.0
    %1325 = vmatpush.msra.mxu0 0.0
    %1326 = vmatpush.msra.mxu0 0.0
    %1327 = vmatpush.msra.mxu0 0.0
    %1328 = vmatpush.msra.mxu0 0.0
    %1329 = vmatpush.msra.mxu0 0.0
    %1330 = vmatpush.msra.mxu0 0.0
    %1331 = vmatpush.msra.mxu0 0.0
    %1332 = vmatpush.msra.mxu0 0.0
    %1333 = vmatpush.msra.mxu0 %v980
    %1334 = vmatmul.f32.gmra.mxu0 %v1316
    %v1335 = vpop.f32.mrf.mxu0
    %v1336 = vadd.f32 0.0, %v1335
    %1337 = vdwg.mxu0
    %v1339 = vsel %vm987, %v1286, 0
    %1341 = vmatpush.msra.mxu0 0.0
    %1342 = vmatpush.msra.mxu0 0.0
    %1343 = vmatpush.msra.mxu0 0.0
    %1344 = vmatpush.msra.mxu0 0.0
    %1345 = vmatpush.msra.mxu0 0.0
    %1346 = vmatpush.msra.mxu0 0.0
    %1347 = vmatpush.msra.mxu0 0.0
    %1348 = vmatpush.msra.mxu0 0.0
    %1349 = vmatpush.msra.mxu0 0.0
    %1350 = vmatpush.msra.mxu0 0.0
    %1351 = vmatpush.msra.mxu0 0.0
    %1352 = vmatpush.msra.mxu0 0.0
    %1353 = vmatpush.msra.mxu0 0.0
    %1354 = vmatpush.msra.mxu0 0.0
    %1355 = vmatpush.msra.mxu0 0.0
    %1356 = vmatpush.msra.mxu0 %v928
    %1357 = vmatmul.f32.gmra.mxu0 %v1339
    %v1358 = vpop.f32.mrf.mxu0
    %v1359 = vadd.f32 0.0, %v1358
    %1360 = vdwg.mxu0
    %v1362 = vsel %vm987, %v1287, 0
    %1364 = vmatpush.msra.mxu0 0.0
    %1365 = vmatpush.msra.mxu0 0.0
    %1366 = vmatpush.msra.mxu0 0.0
    %1367 = vmatpush.msra.mxu0 0.0
    %1368 = vmatpush.msra.mxu0 0.0
    %1369 = vmatpush.msra.mxu0 0.0
    %1370 = vmatpush.msra.mxu0 0.0
    %1371 = vmatpush.msra.mxu0 0.0
    %1372 = vmatpush.msra.mxu0 0.0
    %1373 = vmatpush.msra.mxu0 0.0
    %1374 = vmatpush.msra.mxu0 0.0
    %1375 = vmatpush.msra.mxu0 0.0
    %1376 = vmatpush.msra.mxu0 0.0
    %1377 = vmatpush.msra.mxu0 0.0
    %1378 = vmatpush.msra.mxu0 0.0
    %1379 = vmatpush.msra.mxu0 %v982
    %1380 = vmatmul.f32.gmra.mxu0 %v1362
    %v1381 = vpop.f32.mrf.mxu0
    %v1382 = vadd.f32 0.0, %v1381
    %1383 = vdwg.mxu0
    %v1385 = vsel %vm987, %v1288, 0
    %1387 = vmatpush.msra.mxu0 0.0
    %1388 = vmatpush.msra.mxu0 0.0
    %1389 = vmatpush.msra.mxu0 0.0
    %1390 = vmatpush.msra.mxu0 0.0
    %1391 = vmatpush.msra.mxu0 0.0
    %1392 = vmatpush.msra.mxu0 0.0
    %1393 = vmatpush.msra.mxu0 0.0
    %1394 = vmatpush.msra.mxu0 0.0
    %1395 = vmatpush.msra.mxu0 0.0
    %1396 = vmatpush.msra.mxu0 0.0
    %1397 = vmatpush.msra.mxu0 0.0
    %1398 = vmatpush.msra.mxu0 0.0
    %1399 = vmatpush.msra.mxu0 0.0
    %1400 = vmatpush.msra.mxu0 0.0
    %1401 = vmatpush.msra.mxu0 0.0
    %1402 = vmatpush.msra.mxu0 %v930
    %1403 = vmatmul.f32.gmra.mxu0 %v1385
    %v1404 = vpop.f32.mrf.mxu0
    %v1405 = vadd.f32 0.0, %v1404
    %1406 = vdwg.mxu0
    %v1408 = vsel %vm987, %v1289, 0
    %1410 = vmatpush.msra.mxu0 0.0
    %1411 = vmatpush.msra.mxu0 0.0
    %1412 = vmatpush.msra.mxu0 0.0
    %1413 = vmatpush.msra.mxu0 0.0
    %1414 = vmatpush.msra.mxu0 0.0
    %1415 = vmatpush.msra.mxu0 0.0
    %1416 = vmatpush.msra.mxu0 0.0
    %1417 = vmatpush.msra.mxu0 0.0
    %1418 = vmatpush.msra.mxu0 0.0
    %1419 = vmatpush.msra.mxu0 0.0
    %1420 = vmatpush.msra.mxu0 0.0
    %1421 = vmatpush.msra.mxu0 0.0
    %1422 = vmatpush.msra.mxu0 0.0
    %1423 = vmatpush.msra.mxu0 0.0
    %1424 = vmatpush.msra.mxu0 0.0
    %1425 = vmatpush.msra.mxu0 %v984
    %1426 = vmatmul.f32.gmra.mxu0 %v1408
    %v1427 = vpop.f32.mrf.mxu0
    %v1428 = vadd.f32 0.0, %v1427
    %1429 = vdwg.mxu0
    %v1431 = vsel %vm987, %v1290, 0
    %1433 = vmatpush.msra.mxu0 0.0
    %1434 = vmatpush.msra.mxu0 0.0
    %1435 = vmatpush.msra.mxu0 0.0
    %1436 = vmatpush.msra.mxu0 0.0
    %1437 = vmatpush.msra.mxu0 0.0
    %1438 = vmatpush.msra.mxu0 0.0
    %1439 = vmatpush.msra.mxu0 0.0
    %1440 = vmatpush.msra.mxu0 0.0
    %1441 = vmatpush.msra.mxu0 0.0
    %1442 = vmatpush.msra.mxu0 0.0
    %1443 = vmatpush.msra.mxu0 0.0
    %1444 = vmatpush.msra.mxu0 0.0
    %1445 = vmatpush.msra.mxu0 0.0
    %1446 = vmatpush.msra.mxu0 0.0
    %1447 = vmatpush.msra.mxu0 0.0
    %1448 = vmatpush.msra.mxu0 %v932
    %1449 = vmatmul.f32.gmra.mxu0 %v1431
    %v1450 = vpop.f32.mrf.mxu0
    %v1451 = vadd.f32 0.0, %v1450
    %1452 = vdwg.mxu0
    %v1454 = vsel %vm987, %v1291, 0
    %1456 = vmatpush.msra.mxu0 0.0
    %1457 = vmatpush.msra.mxu0 0.0
    %1458 = vmatpush.msra.mxu0 0.0
    %1459 = vmatpush.msra.mxu0 0.0
    %1460 = vmatpush.msra.mxu0 0.0
    %1461 = vmatpush.msra.mxu0 0.0
    %1462 = vmatpush.msra.mxu0 0.0
    %1463 = vmatpush.msra.mxu0 0.0
    %1464 = vmatpush.msra.mxu0 0.0
    %1465 = vmatpush.msra.mxu0 0.0
    %1466 = vmatpush.msra.mxu0 0.0
    %1467 = vmatpush.msra.mxu0 0.0
    %1468 = vmatpush.msra.mxu0 0.0
    %1469 = vmatpush.msra.mxu0 0.0
    %1470 = vmatpush.msra.mxu0 0.0
    %1471 = vmatpush.msra.mxu0 %v986
    %1472 = vmatmul.f32.gmra.mxu0 %v1454
    %v1473 = vpop.f32.mrf.mxu0
    %v1474 = vadd.f32 0.0, %v1473
    %1475 = vdwg.mxu0
    %v1476 = vrot.slane %v1405, 4
    %v1477 = vsel %vm287, %v1476, %v1313
    %v1478 = vrot.slane %v1313, 4
    %v1479 = vsel %vm287, %v1405, %v1478
    %v1481 = vunpack.c.l.s4 1983009808
    %v1482 = vunpack.c.0.s8 %v1481
    %v1483 = vperm.slane %v1477, %v1482
    %v1485 = vunpack.c.l.s4 1983009808
    %v1486 = vunpack.c.0.s8 %v1485
    %v1487 = vperm.slane %v1479, %v1486
    %v1488 = vrot.slane %v1451, 4
    %v1489 = vsel %vm287, %v1488, %v1359
    %v1490 = vrot.slane %v1359, 4
    %v1491 = vsel %vm287, %v1451, %v1490
    %v1493 = vunpack.c.l.s4 1983009808
    %v1494 = vunpack.c.0.s8 %v1493
    %v1495 = vperm.slane %v1489, %v1494
    %v1497 = vunpack.c.l.s4 1983009808
    %v1498 = vunpack.c.0.s8 %v1497
    %v1499 = vperm.slane %v1491, %v1498
    %v1500 = vrot.slane %v1495, 4
    %v1501 = vsel %vm287, %v1500, %v1483
    %v1502 = vrot.slane %v1483, 4
    %v1503 = vsel %vm287, %v1495, %v1502
    %v1505 = vunpack.c.l.s4 1934713408
    %v1506 = vunpack.c.0.s8 %v1505
    %v1507 = vperm.slane %v1501, %v1506
    %v1509 = vunpack.c.l.s4 1934713408
    %v1510 = vunpack.c.0.s8 %v1509
    %v1511 = vperm.slane %v1503, %v1510
    %v1512 = vrot.slane %v1499, 4
    %v1513 = vsel %vm287, %v1512, %v1487
    %v1514 = vrot.slane %v1487, 4
    %v1515 = vsel %vm287, %v1499, %v1514
    %v1517 = vunpack.c.l.s4 1934713408
    %v1518 = vunpack.c.0.s8 %v1517
    %v1519 = vperm.slane %v1513, %v1518
    %v1521 = vunpack.c.l.s4 1934713408
    %v1522 = vunpack.c.0.s8 %v1521
    %v1523 = vperm.slane %v1515, %v1522
    %v1524 = vrot.slane %v1507, 4
    %v1525 = vsel %vm287, 0.0, %v1524
    %v1526 = vrot.slane %v1511, 4
    %v1527 = vsel %vm287, 0.0, %v1526
    %v1528 = vrot.slane %v1519, 4
    %v1529 = vsel %vm287, 0.0, %v1528
    %v1530 = vrot.slane %v1523, 4
    %v1531 = vsel %vm287, 0.0, %v1530
    %v1532 = vrot.slane %v1428, 4
    %v1533 = vsel %vm287, %v1532, %v1336
    %v1534 = vrot.slane %v1336, 4
    %v1535 = vsel %vm287, %v1428, %v1534
    %v1537 = vunpack.c.l.s4 1983009808
    %v1538 = vunpack.c.0.s8 %v1537
    %v1539 = vperm.slane %v1533, %v1538
    %v1541 = vunpack.c.l.s4 1983009808
    %v1542 = vunpack.c.0.s8 %v1541
    %v1543 = vperm.slane %v1535, %v1542
    %v1544 = vrot.slane %v1474, 4
    %v1545 = vsel %vm287, %v1544, %v1382
    %v1546 = vrot.slane %v1382, 4
    %v1547 = vsel %vm287, %v1474, %v1546
    %v1549 = vunpack.c.l.s4 1983009808
    %v1550 = vunpack.c.0.s8 %v1549
    %v1551 = vperm.slane %v1545, %v1550
    %v1553 = vunpack.c.l.s4 1983009808
    %v1554 = vunpack.c.0.s8 %v1553
    %v1555 = vperm.slane %v1547, %v1554
    %v1556 = vrot.slane %v1551, 4
    %v1557 = vsel %vm287, %v1556, %v1539
    %v1558 = vrot.slane %v1539, 4
    %v1559 = vsel %vm287, %v1551, %v1558
    %v1561 = vunpack.c.l.s4 1934713408
    %v1562 = vunpack.c.0.s8 %v1561
    %v1563 = vperm.slane %v1557, %v1562
    %v1565 = vunpack.c.l.s4 1934713408
    %v1566 = vunpack.c.0.s8 %v1565
    %v1567 = vperm.slane %v1559, %v1566
    %v1568 = vrot.slane %v1555, 4
    %v1569 = vsel %vm287, %v1568, %v1543
    %v1570 = vrot.slane %v1543, 4
    %v1571 = vsel %vm287, %v1555, %v1570
    %v1573 = vunpack.c.l.s4 1934713408
    %v1574 = vunpack.c.0.s8 %v1573
    %v1575 = vperm.slane %v1569, %v1574
    %v1577 = vunpack.c.l.s4 1934713408
    %v1578 = vunpack.c.0.s8 %v1577
    %v1579 = vperm.slane %v1571, %v1578
    %v1580 = vrot.slane %v1563, 4
    %v1581 = vsel %vm287, 0.0, %v1580
    %v1582 = vrot.slane %v1567, 4
    %v1583 = vsel %vm287, 0.0, %v1582
    %v1584 = vrot.slane %v1575, 4
    %v1585 = vsel %vm287, 0.0, %v1584
    %v1586 = vrot.slane %v1579, 4
    %v1587 = vsel %vm287, 0.0, %v1586
    %v1588 = vsel %vm287, %v1526, %v1507
    %v1590 = vunpack.c.l.s4 1983009808
    %v1591 = vunpack.c.0.s8 %v1590
    %v1592 = vperm.slane %v1588, %v1591
    %v1593 = vrot.slane %v1527, 4
    %v1594 = vsel %vm287, %v1593, %v1525
    %v1596 = vunpack.c.l.s4 1983009808
    %v1597 = vunpack.c.0.s8 %v1596
    %v1598 = vperm.slane %v1594, %v1597
    %v1599 = vsel %vm287, %v1530, %v1519
    %v1601 = vunpack.c.l.s4 1983009808
    %v1602 = vunpack.c.0.s8 %v1601
    %v1603 = vperm.slane %v1599, %v1602
    %v1604 = vrot.slane %v1531, 4
    %v1605 = vsel %vm287, %v1604, %v1529
    %v1607 = vunpack.c.l.s4 1983009808
    %v1608 = vunpack.c.0.s8 %v1607
    %v1609 = vperm.slane %v1605, %v1608
    %v1610 = vrot.slane %v1598, 4
    %v1611 = vsel %vm287, %v1610, %v1592
    %v1612 = vrot.slane %v1592, 4
    %v1613 = vsel %vm287, %v1598, %v1612
    %v1615 = vunpack.c.l.s4 1934713408
    %v1616 = vunpack.c.0.s8 %v1615
    %v1617 = vperm.slane %v1611, %v1616
    %v1619 = vunpack.c.l.s4 1934713408
    %v1620 = vunpack.c.0.s8 %v1619
    %v1621 = vperm.slane %v1613, %v1620
    %v1622 = vrot.slane %v1609, 4
    %v1623 = vsel %vm287, %v1622, %v1603
    %v1624 = vrot.slane %v1603, 4
    %v1625 = vsel %vm287, %v1609, %v1624
    %v1627 = vunpack.c.l.s4 1934713408
    %v1628 = vunpack.c.0.s8 %v1627
    %v1629 = vperm.slane %v1623, %v1628
    %v1631 = vunpack.c.l.s4 1934713408
    %v1632 = vunpack.c.0.s8 %v1631
    %v1633 = vperm.slane %v1625, %v1632
    %v1634 = vrot.slane %v1629, 4
    %v1635 = vsel %vm287, %v1634, %v1617
    %v1636 = vrot.slane %v1617, 4
    %v1637 = vsel %vm287, %v1629, %v1636
    %v1638 = vrot.slane %v1633, 4
    %v1639 = vsel %vm287, %v1638, %v1621
    %v1640 = vrot.slane %v1621, 4
    %v1641 = vsel %vm287, %v1633, %v1640
    %v1642 = vsel %vm287, %v1582, %v1563
    %v1644 = vunpack.c.l.s4 1983009808
    %v1645 = vunpack.c.0.s8 %v1644
    %v1646 = vperm.slane %v1642, %v1645
    %v1647 = vrot.slane %v1583, 4
    %v1648 = vsel %vm287, %v1647, %v1581
    %v1650 = vunpack.c.l.s4 1983009808
    %v1651 = vunpack.c.0.s8 %v1650
    %v1652 = vperm.slane %v1648, %v1651
    %v1653 = vsel %vm287, %v1586, %v1575
    %v1655 = vunpack.c.l.s4 1983009808
    %v1656 = vunpack.c.0.s8 %v1655
    %v1657 = vperm.slane %v1653, %v1656
    %v1658 = vrot.slane %v1587, 4
    %v1659 = vsel %vm287, %v1658, %v1585
    %v1661 = vunpack.c.l.s4 1983009808
    %v1662 = vunpack.c.0.s8 %v1661
    %v1663 = vperm.slane %v1659, %v1662
    %v1664 = vrot.slane %v1652, 4
    %v1665 = vsel %vm287, %v1664, %v1646
    %v1666 = vrot.slane %v1646, 4
    %v1667 = vsel %vm287, %v1652, %v1666
    %v1669 = vunpack.c.l.s4 1934713408
    %v1670 = vunpack.c.0.s8 %v1669
    %v1671 = vperm.slane %v1665, %v1670
    %v1673 = vunpack.c.l.s4 1934713408
    %v1674 = vunpack.c.0.s8 %v1673
    %v1675 = vperm.slane %v1667, %v1674
    %v1676 = vrot.slane %v1663, 4
    %v1677 = vsel %vm287, %v1676, %v1657
    %v1678 = vrot.slane %v1657, 4
    %v1679 = vsel %vm287, %v1663, %v1678
    %v1681 = vunpack.c.l.s4 1934713408
    %v1682 = vunpack.c.0.s8 %v1681
    %v1683 = vperm.slane %v1677, %v1682
    %v1685 = vunpack.c.l.s4 1934713408
    %v1686 = vunpack.c.0.s8 %v1685
    %v1687 = vperm.slane %v1679, %v1686
    %v1688 = vrot.slane %v1683, 4
    %v1689 = vsel %vm287, %v1688, %v1671
    %v1690 = vrot.slane %v1671, 4
    %v1691 = vsel %vm287, %v1683, %v1690
    %v1692 = vrot.slane %v1687, 4
    %v1693 = vsel %vm287, %v1692, %v1675
    %v1694 = vrot.slane %v1675, 4
    %v1695 = vsel %vm287, %v1687, %v1694
    %1698 = vrot.lane.b32.xlu0 %v1637, 8
    %v1699 = vpop.permute.xlu0 %1698
    %1700 = vrot.lane.b32.xlu0 %v1691, 8
    %v1701 = vpop.permute.xlu0 %1700
    %1706 = vrot.lane.b32.xlu0 %v1639, 16
    %v1707 = vpop.permute.xlu0 %1706
    %1708 = vrot.lane.b32.xlu0 %v1693, 16
    %v1709 = vpop.permute.xlu0 %1708
    %1714 = vrot.lane.b32.xlu0 %v1641, 24
    %v1715 = vpop.permute.xlu0 %1714
    %1716 = vrot.lane.b32.xlu0 %v1695, 24
    %v1717 = vpop.permute.xlu0 %1716
    %v1720 = vsel %vm987, %v1635, %v1699
    %v1721 = vsel %vm987, %v1689, %v1701
    %vm1722 = vcmask 130048
    %v1723 = vsel %vm1722, %v1720, %v1707
    %v1724 = vsel %vm1722, %v1721, %v1709
    %vm1725 = vcmask 195584
    %v1726 = vsel %vm1725, %v1723, %v1715
    %v1727 = vsel %vm1725, %v1724, %v1717
    %v1728 = vld [vmem:[#allocation13] sm:$0xff]
    %v1729 = vld [vmem:[#allocation13 + $0x8] sm:$0xff]
    %v1730 = vld [vmem:[#allocation13 + $0x10] sm:$0xff]
    %v1731 = vld [vmem:[#allocation13 + $0x18] sm:$0xff]
    %v1732 = vld [vmem:[%s10] sm:$0x1]
    %v1734 = vperm.slane %v1732, 0
    %v1737 = vsel %vm162, %v1726, 0
    %v1740 = vsel %vm162, %v1727, 0
    %1742 = vmatpush.msra.mxu0 0.0
    %1743 = vmatpush.msra.mxu0 0.0
    %1744 = vmatpush.msra.mxu0 0.0
    %1745 = vmatpush.msra.mxu0 0.0
    %1746 = vmatpush.msra.mxu0 0.0
    %1747 = vmatpush.msra.mxu0 0.0
    %1748 = vmatpush.msra.mxu0 0.0
    %1749 = vmatpush.msra.mxu0 0.0
    %1750 = vmatpush.msra.mxu0 0.0
    %1751 = vmatpush.msra.mxu0 0.0
    %1752 = vmatpush.msra.mxu0 0.0
    %1753 = vmatpush.msra.mxu0 0.0
    %1754 = vmatpush.msra.mxu0 %v1731
    %1755 = vmatpush.msra.mxu0 %v1730
    %1756 = vmatpush.msra.mxu0 %v1729
    %1757 = vmatpush.msra.mxu0 %v1728
    %1758 = vmatmul.f32.gmra.mxu0 %v1737
    %v1759 = vpop.f32.mrf.mxu0
    %v1760 = vadd.f32 %v1734, %v1759
    %1761 = vmatmul.f32.gmra.mxu0 %v1740
    %v1762 = vpop.f32.mrf.mxu0
    %v1763 = vadd.f32 %v1734, %v1762
    %1764 = vdwg.mxu0
    %1765 = vst.msk [vmem:[#allocation14] sm:$0xff] %vm162, %v1760
    %1766 = vst.msk [vmem:[#allocation14 + $0x8] sm:$0xff] %vm162, %v1763
    // Predicated region
    $region74: #{tpu_custom_call.1} parent=1 // pred_check
      _
    $region75: #{tpu_custom_call.1} parent=1 // pred_check_branch
      %1768 = sbr.rel (0) target = $region77
    $region76: #{tpu_custom_call.1} parent=1 // pred_region
      %1770 = vsyncadd [#allocation4], 0
      %s1771 = sshll.u32 [#allocation14], 4
      %s1772 = int_to_ptr.vmem [resolvable:$true] %s1771
      %s1773 = sshll.u32 %s11, 4
      %s1774 = int_to_ptr.hbm [resolvable:$true] %s1773
      %1779 = dma.vmem_to_hbm [thread:$0]  %s1772, 256, %s1774, [#allocation4], 128, 128, 8
    $region77: #{tpu_custom_call.1} parent=1 // pred_fallthru
      _
    // Predicated region
    $region78: #{tpu_custom_call.1} parent=1 // pred_check
      _
    $region79: #{tpu_custom_call.1} parent=1 // pred_check_branch
      %1781 = sbr.rel (0) target = $region81
    $region80: #{tpu_custom_call.1} parent=1 // pred_region
      %1783 = dma.done [#allocation4], 256
    $region81: #{tpu_custom_call.1} parent=1 // pred_fallthru
      _
    %1784 = vsyncpa [#allocation3], 1
    %1785 = vsyncpa [#allocation6], 1
    %1786 = vsyncpa [#allocation9], 1
    %1787 = vsyncpa [#allocation12], 1
    %1788 = vsyncpa [#allocation4], 1

</llo_original>
